<compile_context>
chip_gen: v6e
topology: v6e:2x2x1
jax: 0.10.0
libtpu: 0.0.40
codegen_flags: <defaults>
</compile_context>

<pallas_src>
import jax
import jax.numpy as jnp
from jax import lax
from jax.experimental import pallas as pl
from jax.experimental.pallas import tpu as pltpu


def _planar_flow_kernel(scal_ref, wg_ref, ug_ref, z_ref, out_ref, det_ref):
    # scal_ref: SMEM (2,)    -> [b, sum(u_new * w)]
    # wg_ref:   VMEM (L, g)  block-diagonal w     (folds the per-group reduce)
    # ug_ref:   VMEM (g, L)  block-diagonal u_new (folds the per-group expand)
    # z_ref:    VMEM (tn, L) g original rows packed per 128-lane row
    # out_ref:  VMEM (tn, L)
    # det_ref:  VMEM (g, tn) lane-dense determinant tile (transposed packing)
    b = scal_ref[0]
    uw = scal_ref[1]

    z = z_ref[...]                                                   # (tn, L)

    # s[r, j] = sum_d w[d] * z_orig[row(r, j), d]  -- tiny MXU matmul.
    s = jnp.dot(z, wg_ref[...],
                preferred_element_type=jnp.float32,
                precision=lax.Precision.HIGHEST)                     # (tn, g)

    # Lane-compact layout for the elementwise math: (g, tn) is lane-dense, so
    # tanh / det touch ~tn/128 vregs instead of tn/8 lane-padded ones.  The
    # small transposes run on the otherwise-idle XLU slot.
    s_t = s.T                                                        # (g, tn)
    h_t = jnp.tanh(s_t + b)                                          # (g, tn)

    # det_j = 1 + (1 - h^2) * sum(u_new * w)   -- stored lane-dense.
    det_ref[...] = 1.0 + (1.0 - h_t * h_t) * uw                      # (g, tn)

    # out = z + u_new * h  (expand h back to the packed layout via the MXU).
    h = h_t.T                                                        # (tn, g)
    out_ref[...] = z + jnp.dot(h, ug_ref[...],
                               preferred_element_type=jnp.float32,
                               precision=lax.Precision.HIGHEST)      # (tn, L)


def _round_up(x, m):
    return -(-x // m) * m


def _plan_row_tiles(rows, row_bytes, target_tile_bytes=2 << 20):
    """Pick (tile_rows, grid_steps): tile ~target_tile_bytes, tile_rows a
    multiple of 128, even grid of >= 2 steps (v7x 2-TC split + DMA overlap).
    Rows are later padded to tile_rows * grid_steps, so no ragged last step."""
    cap = max(128, (target_tile_bytes // row_bytes) // 128 * 128)
    steps = max(2, -(-rows // cap))
    if steps % 2:
        steps += 1                       # even grid: no idle-TC tail on v7x
    tn = _round_up(max(1, -(-rows // steps)), 128)
    tn = min(tn, cap)
    return tn, steps


def planar_flow(z, u, w, b):
    """Pallas implementation of PlanarFlow.forward.

    z: (N, D) float32;  u, w: (D,);  b: (1,)
    Returns (out, det_j) with shapes (N, D) and (N,).
    """
    z = jnp.asarray(z, jnp.float32)
    u = jnp.asarray(u, jnp.float32)
    w = jnp.asarray(w, jnp.float32)
    b = jnp.asarray(b, jnp.float32)
    N, D = z.shape

    # --- u_new re-parameterization (data-independent, tiny; plain JAX glue) ---
    wtu = jnp.sum(w * u)
    correction = (-1.0 + jax.nn.softplus(wtu) - wtu) * w / (jnp.sum(w * w) + 1e-8)
    u_new = jnp.where(wtu <= -1.0, u + correction, u)
    uw_sum = jnp.sum(u_new * w)
    b_scalar = b.reshape(())

    # Fast path: tiny problems (launch overhead dominates) or absurdly wide D
    # (keeps the lane-dense det BlockSpec rules trivially satisfied).
    if N * D <= 4096 or D > 4096:
        h = jnp.tanh(z @ w + b_scalar)
        out = z + u_new[None, :] * h[:, None]
        det = 1.0 + (1.0 - h * h) * uw_sum
        return out, det

    # --- lane packing: g original rows per 128-lane packed row --------------
    if D < 128:
        g = 128 // D          # floor; padded lanes handle 128 % D != 0
        L = 128
    else:
        g = 1
        L = D
    pad_rows = (-N) % g
    Np = (N + pad_rows) // g
    pad_lanes = L - g * D

    zp = z
    if pad_rows:
        zp = jnp.pad(zp, ((0, pad_rows), (0, 0)))
    zp = zp.reshape(Np, g * D)
    if pad_lanes:
        zp = jnp.pad(zp, ((0, 0), (0, pad_lanes)))

    # Block-diagonal parameter matrices (zeros in padded lanes).
    eye = jnp.eye(g, dtype=jnp.float32)
    # Wg[l, j] = w[l % D] if (l // D == j) else 0          -> (L, g)
    wg = (eye[:, None, :] * w[None, :, None]).reshape(g * D, g)
    # Ug[j, l] = u_new[l % D] if (l // D == j) else 0      -> (g, L)
    ug = (eye[:, :, None] * u_new[None, None, :]).reshape(g, g * D)
    if pad_lanes:
        wg = jnp.pad(wg, ((0, pad_lanes), (0, 0)))
        ug = jnp.pad(ug, ((0, 0), (0, pad_lanes)))

    # Row tiling + zero-pad so the tile divides exactly.
    tn, steps = _plan_row_tiles(Np, L * 4)
    Np_pad = tn * steps
    if Np_pad != Np:
        zp = jnp.pad(zp, ((0, Np_pad - Np), (0, 0)))

    # Flat 1-D SMEM scalars: [b, sum(u_new * w)]  (avoids 2-D SMEM padding).
    scalars = jnp.stack([b_scalar, uw_sum]).astype(jnp.float32)

    # VMEM budget: z/out double buffers (4x tile), in-kernel (tn, L)/(tn,128)
    # f32 temporaries, small det/param buffers, plus headroom.  Stays well
    # under v7x's 64 MiB physical VMEM; raises v5e's 16 MiB scoped default.
    tile_bytes = tn * L * 4
    vmem_limit = int(min(48 << 20, 12 * tile_bytes + (8 << 20)))

    out_p, det_p = pl.pallas_call(
        _planar_flow_kernel,
        out_shape=(
            jax.ShapeDtypeStruct((Np_pad, L), jnp.float32),
            jax.ShapeDtypeStruct((g, Np_pad), jnp.float32),
        ),
        grid_spec=pltpu.PrefetchScalarGridSpec(
            num_scalar_prefetch=0,
            grid=(steps,),
            in_specs=[
                pl.BlockSpec(memory_space=pltpu.MemorySpace.SMEM),   # scalars
                pl.BlockSpec((L, g), lambda i: (0, 0)),   # wg (block-invariant)
                pl.BlockSpec((g, L), lambda i: (0, 0)),   # ug (block-invariant)
                pl.BlockSpec((tn, L), lambda i: (i, 0)),  # z tile (lane dense)
            ],
            out_specs=[
                pl.BlockSpec((tn, L), lambda i: (i, 0)),  # out tile (lane dense)
                pl.BlockSpec((g, tn), lambda i: (0, i)),  # det tile (lane dense)
            ],
        ),
        compiler_params=pltpu.CompilerParams(
            dimension_semantics=("parallel",),
            vmem_limit_bytes=vmem_limit,
        ),
    )(scalars, wg, ug, zp)

    out = out_p[:Np, :g * D].reshape(Np * g, D)[:N]
    det = det_p[:, :Np].T.reshape(Np * g)[:N]
    return out, det


def _reference(z, u, w, b):
    wtu = jnp.sum(w * u)
    u_new = jnp.where(
        wtu <= -1.0,
        u + (-1.0 + jax.nn.softplus(wtu) - wtu) * w / (jnp.sum(w * w) + 1e-8),
        u,
    )
    wtz_p_b = jnp.tanh(jnp.sum(w * z, axis=1) + b)          # (N,)
    out = z + u_new[None, :] * wtz_p_b[:, None]
    det_j = 1.0 + (1.0 - wtz_p_b ** 2) * jnp.sum(u_new * w)
    return out, det_j


if __name__ == "__main__":
    key = jax.random.PRNGKey(0)
    k_z, k_u, k_w, k_b = jax.random.split(key, 4)

    # Big enough to exercise the Pallas path (packed grid = 2 parallel steps).
    N, D = 1024, 32
    z = jax.random.normal(k_z, (N, D), dtype=jnp.float32)
    # Parameters initialized uniformly in [-0.01, 0.01], matching reset_parameters().
    u = jax.random.uniform(k_u, (D,), minval=-0.01, maxval=0.01, dtype=jnp.float32)
    w = jax.random.uniform(k_w, (D,), minval=-0.01, maxval=0.01, dtype=jnp.float32)
    b = jax.random.uniform(k_b, (1,), minval=-0.01, maxval=0.01, dtype=jnp.float32)

    out, det_j = planar_flow(z, u, w, b)
    out = jax.block_until_ready(out)
    det_j = jax.block_until_ready(det_j)

    out_ref, det_ref = _reference(z, u, w, b)
    assert out.shape == (N, D) and det_j.shape == (N,)
    assert jnp.allclose(out, out_ref, atol=1e-5, rtol=1e-5), \
        float(jnp.max(jnp.abs(out - out_ref)))
    assert jnp.allclose(det_j, det_ref, atol=1e-5, rtol=1e-5), \
        float(jnp.max(jnp.abs(det_j - det_ref)))

    print("KERNEL_OK")
</pallas_src>

<mosaic_0001>
module attributes {stable_mosaic.version = 11 : i64} {
  func.func @_planar_flow_kernel(%arg0: i32, %arg1: memref<2xf32, #tpu.memory_space<smem>>, %arg2: memref<128x4xf32, #tpu.memory_space<vmem>>, %arg3: memref<4x128xf32, #tpu.memory_space<vmem>>, %arg4: memref<128x128xf32, #tpu.memory_space<vmem>>, %arg5: memref<128x128xf32, #tpu.memory_space<vmem>>, %arg6: memref<4x128xf32, #tpu.memory_space<vmem>>) attributes {dimension_semantics = [#tpu.dimension_semantics<parallel>], iteration_bounds = array<i64: 2>, scalar_prefetch = 0 : i64, scratch_operands = 0 : i64, tpu.core_type = #tpu.core_type<tc>, window_params = [{transform_indices = @transform_0, window_bounds = array<i64: 2>}, {pipeline_mode = #tpu.pipeline_mode<synchronous>, transform_indices = @transform_1, window_bounds = array<i64: 128, 4>}, {pipeline_mode = #tpu.pipeline_mode<synchronous>, transform_indices = @transform_2, window_bounds = array<i64: 4, 128>}, {transform_indices = @transform_3, window_bounds = array<i64: 128, 128>}, {transform_indices = @transform_4, window_bounds = array<i64: 128, 128>}, {transform_indices = @transform_5, window_bounds = array<i64: 4, 128>}]} {
    %c0 = arith.constant 0 : index
    %0 = memref.load %arg1[%c0] : memref<2xf32, #tpu.memory_space<smem>>
    %c1 = arith.constant 1 : index
    %1 = memref.load %arg1[%c1] : memref<2xf32, #tpu.memory_space<smem>>
    %c0_0 = arith.constant 0 : index
    %c0_1 = arith.constant 0 : index
    %2 = vector.load %arg4[%c0_0, %c0_1] : memref<128x128xf32, #tpu.memory_space<vmem>>, vector<128x128xf32>
    %c0_2 = arith.constant 0 : index
    %c0_3 = arith.constant 0 : index
    %3 = vector.load %arg2[%c0_2, %c0_3] : memref<128x4xf32, #tpu.memory_space<vmem>>, vector<128x4xf32>
    %cst = arith.constant dense<0.000000e+00> : vector<128x4xf32>
    %4 = tpu.matmul %2, %3, %cst {dimension_numbers = #tpu.dot_dimension_numbers<[1], [0], [0], [1], [0, 0, 1, 1], [], []>, precision = #tpu.contract_precision<fp32>} : vector<128x128xf32>, vector<128x4xf32>, vector<128x4xf32> -> vector<128x4xf32>
    %5 = tpu.transpose %4, [1, 0] : vector<128x4xf32> -> vector<4x128xf32>
    %6 = vector.broadcast %0 : f32 to vector<4x128xf32>
    %7 = arith.addf %5, %6 : vector<4x128xf32>
    %8 = math.tanh %7 : vector<4x128xf32>
    %9 = arith.mulf %8, %8 : vector<4x128xf32>
    %cst_4 = arith.constant 1.000000e+00 : f32
    %10 = vector.broadcast %cst_4 : f32 to vector<4x128xf32>
    %11 = arith.subf %10, %9 : vector<4x128xf32>
    %12 = vector.broadcast %1 : f32 to vector<4x128xf32>
    %13 = arith.mulf %11, %12 : vector<4x128xf32>
    %cst_5 = arith.constant 1.000000e+00 : f32
    %14 = vector.broadcast %cst_5 : f32 to vector<4x128xf32>
    %15 = arith.addf %14, %13 : vector<4x128xf32>
    %c0_6 = arith.constant 0 : index
    %c0_7 = arith.constant 0 : index
    %16 = vector.load %arg6[%c0_6, %c0_7] : memref<4x128xf32, #tpu.memory_space<vmem>>, vector<4x128xf32>
    tpu.vector_store %arg6[%c0_6, %c0_7], %15 {strides = array<i32>} : memref<4x128xf32, #tpu.memory_space<vmem>>, vector<4x128xf32>,
    %17 = tpu.transpose %8, [1, 0] : vector<4x128xf32> -> vector<128x4xf32>
    %c0_8 = arith.constant 0 : index
    %c0_9 = arith.constant 0 : index
    %18 = vector.load %arg3[%c0_8, %c0_9] : memref<4x128xf32, #tpu.memory_space<vmem>>, vector<4x128xf32>
    %cst_10 = arith.constant dense<0.000000e+00> : vector<128x128xf32>
    %19 = tpu.matmul %17, %18, %cst_10 {dimension_numbers = #tpu.dot_dimension_numbers<[1], [0], [0], [1], [0, 0, 1, 1], [], []>, precision = #tpu.contract_precision<fp32>} : vector<128x4xf32>, vector<4x128xf32>, vector<128x128xf32> -> vector<128x128xf32>
    %20 = arith.addf %2, %19 : vector<128x128xf32>
    %c0_11 = arith.constant 0 : index
    %c0_12 = arith.constant 0 : index
    %21 = vector.load %arg5[%c0_11, %c0_12] : memref<128x128xf32, #tpu.memory_space<vmem>>, vector<128x128xf32>
    tpu.vector_store %arg5[%c0_11, %c0_12], %20 {strides = array<i32>} : memref<128x128xf32, #tpu.memory_space<vmem>>, vector<128x128xf32>,
    return
  }
  func.func @transform_0(%arg0: i32) -> i32 {
    %c0_i32 = arith.constant 0 : i32
    %c0_i32_0 = arith.constant 0 : i32
    return %c0_i32 : i32
  }
  func.func @transform_1(%arg0: i32) -> (i32, i32) {
    %c0_i32 = arith.constant 0 : i32
    %c0_i32_0 = arith.constant 0 : i32
    %c0_i32_1 = arith.constant 0 : i32
    return %c0_i32, %c0_i32_0 : i32, i32
  }
  func.func @transform_2(%arg0: i32) -> (i32, i32) {
    %c0_i32 = arith.constant 0 : i32
    %c0_i32_0 = arith.constant 0 : i32
    %c0_i32_1 = arith.constant 0 : i32
    return %c0_i32, %c0_i32_0 : i32, i32
  }
  func.func @transform_3(%arg0: i32) -> (i32, i32) {
    %c0_i32 = arith.constant 0 : i32
    %c0_i32_0 = arith.constant 0 : i32
    return %arg0, %c0_i32 : i32, i32
  }
  func.func @transform_4(%arg0: i32) -> (i32, i32) {
    %c0_i32 = arith.constant 0 : i32
    %c0_i32_0 = arith.constant 0 : i32
    return %arg0, %c0_i32 : i32, i32
  }
  func.func @transform_5(%arg0: i32) -> (i32, i32) {
    %c0_i32 = arith.constant 0 : i32
    %c0_i32_0 = arith.constant 0 : i32
    return %c0_i32, %arg0 : i32, i32
  }
}

</mosaic_0001>

<llo_original>
// kernel: tpu_custom_call.1
$region0: #{tpu_custom_call.1}
  #allocation0 [shape = 'u32[]', space=smem, size = 0x4, offset = 0x4, fixed_abs, tag = 'smem constant byte address 0x4 - core index']
  #allocation1 [shape = 'u32[144,128]{1,0:T(1,128)}', space=vmem, size = 0x12000, scoped, tag = 'internal scratch']
  %s0 = inlined_call_operand.vmem [shape: f32[2], index: 0, kind: input, shape index: {}]
  %s1 = inlined_call_operand.vmem [shape: f32[128,4], index: 1, kind: input, shape index: {}]
  %s2 = inlined_call_operand.vmem [shape: f32[4,128], index: 2, kind: input, shape index: {}]
  %s3 = inlined_call_operand.hbm [shape: f32[256,128], index: 3, kind: input, shape index: {}]
  %s4 = inlined_call_operand.hbm [shape: f32[256,128], index: 4, kind: output, shape index: {0}]
  %s5 = inlined_call_operand.hbm [shape: f32[4,256], index: 5, kind: output, shape index: {1}]
  %6 = xla_tuple %s4, %s5
  %s7 = sld [smem:[#allocation0]]
  $region65: #{tpu_custom_call.1} parent=0
    _
  %s9 = ssub.s32 1, %s7
  %s10 = scalar_select 0, %s9, %s7
  $region1: #{tpu_custom_call.1} parent=0
    #allocation2 [shape = 'u8[512]{0}', space=smem, size = 0x200, scoped, tag = 'input window, operand 0, single buffered']
    #allocation3 [shape = 's32[2]{0}', space=sflag, size = 0x8, scoped, tag = 'scoped memory for tpu_custom_call.1']
    #allocation4 [shape = 's32[2]{0}', space=sflag, size = 0x8, scoped, tag = 'scoped memory for tpu_custom_call.1']
    #allocation5 [shape = 's32[2]{0}', space=sflag, size = 0x8, scoped, tag = 'scoped memory for tpu_custom_call.1']
    #allocation6 [shape = 'u8[131072]{0}', space=vmem, size = 0x20000, scoped, tag = 'input window, operand 3']
    #allocation7 [shape = 'u8[131072]{0}', space=vmem, size = 0x20000, scoped, tag = 'output window, operand 0']
    #allocation8 [shape = 'u8[4096]{0}', space=vmem, size = 0x1000, scoped, tag = 'output window, operand 1']
    #allocation9 [shape = 's32[2]{0}', space=sflag, size = 0x8, scoped, tag = 'scoped memory for tpu_custom_call.1']
    %11 = vsyncpa [#allocation5], 0
    %12 = vsyncpa [#allocation3], 0
    %s13 = scalar_lea.sflag [#allocation3], 1
    %14 = vsyncpa %s13, 0
    %15 = vsyncpa [#allocation4], 0
    %s16 = scalar_lea.sflag [#allocation4], 1
    %17 = vsyncpa %s16, 0
    %18 = vsyncpa [#allocation9], 0
    %s19 = scalar_lea.sflag [#allocation9], 1
    %20 = vsyncpa %s19, 0
    loop: start=0, step=1, limit=4
    $region2: #{tpu_custom_call.1} parent=1 // loop_pre_header
      _
    $region3: #{tpu_custom_call.1} parent=1 // loop_header
      %s22 = sphi 0, %s26
      %p23 = scmp.ge.s32.totalorder %s22, 4
      %s30 = sphi 0, %s30
      %s32 = sphi 0, %s30
      %s33 = sphi 0, %s32
      %s47 = sphi 0, %s33
      %s51 = sphi 0, %s51
      %s53 = sphi 0, %s51
      %s54 = sphi 0, %s53
      %s68 = sphi 0, %s54
      %s72 = sphi 0, %s72
      %s74 = sphi 0, %s72
      %s75 = sphi 0, %s74
      %s89 = sphi 0, %s75
      %s95 = sphi 0, %s97
      %s98 = sphi 0, %s95
      %s99 = sphi 0, %s98
      %s115 = sphi 0, %s99
      %s121 = sphi 0, %s123
      %s124 = sphi 0, %s121
      %s125 = sphi 0, %s124
      %s141 = sphi 0, %s125
      %s147 = sphi 0, %s149
      %s150 = sphi 0, %s147
      %s151 = sphi 0, %s150
      %s167 = sphi 0, %s151
    $region4: #{tpu_custom_call.1} parent=1 // loop_header_branch
      %25 = sbr.rel (%p23) target = $region8
    $region5: #{tpu_custom_call.1} parent=1 // loop_body
      %s27 = ssub.s32 %s22, 1
      %s28 = ssub.s32 %s22, 2
      %s29 = sadd.s32 %s22, 1
      %s31 = sadd.s32 %s30, 1
      %p34 = scmp.eq.s32.totalorder %s22, 1
      %p35 = scmp.ne.s32.totalorder %s30, %s32
      %p36 = scmp.eq.s32.totalorder %s22, 0
      %p37 = por %p35, %p36
      %p38 = scmp.ne.s32.totalorder %s30, %s32
      %p39 = scmp.eq.s32.totalorder %s27, 1
      %p40 = por %p38, %p39
      %p41 = scmp.ne.s32.totalorder %s32, %s33
      %p42 = scmp.eq.s32.totalorder %s27, 0
      %p43 = por %p41, %p42
      %p44 = scmp.ne.s32.totalorder %s32, %s33
      %p45 = scmp.eq.s32.totalorder %s28, 1
      %p46 = por %p44, %p45
      %p48 = scmp.ne.s32.totalorder %s33, %s47
      %p49 = scmp.eq.s32.totalorder %s28, 0
      %p50 = por %p48, %p49
      %s52 = sadd.s32 %s51, 1
      %p55 = scmp.eq.s32.totalorder %s22, 1
      %p56 = scmp.ne.s32.totalorder %s51, %s53
      %p57 = scmp.eq.s32.totalorder %s22, 0
      %p58 = por %p56, %p57
      %p59 = scmp.ne.s32.totalorder %s51, %s53
      %p60 = scmp.eq.s32.totalorder %s27, 1
      %p61 = por %p59, %p60
      %p62 = scmp.ne.s32.totalorder %s53, %s54
      %p63 = scmp.eq.s32.totalorder %s27, 0
      %p64 = por %p62, %p63
      %p65 = scmp.ne.s32.totalorder %s53, %s54
      %p66 = scmp.eq.s32.totalorder %s28, 1
      %p67 = por %p65, %p66
      %p69 = scmp.ne.s32.totalorder %s54, %s68
      %p70 = scmp.eq.s32.totalorder %s28, 0
      %p71 = por %p69, %p70
      %s73 = sadd.s32 %s72, 1
      %p76 = scmp.eq.s32.totalorder %s22, 1
      %p77 = scmp.ne.s32.totalorder %s72, %s74
      %p78 = scmp.eq.s32.totalorder %s22, 0
      %p79 = por %p77, %p78
      %p80 = scmp.ne.s32.totalorder %s72, %s74
      %p81 = scmp.eq.s32.totalorder %s27, 1
      %p82 = por %p80, %p81
      %p83 = scmp.ne.s32.totalorder %s74, %s75
      %p84 = scmp.eq.s32.totalorder %s27, 0
      %p85 = por %p83, %p84
      %p86 = scmp.ne.s32.totalorder %s74, %s75
      %p87 = scmp.eq.s32.totalorder %s28, 1
      %p88 = por %p86, %p87
      %p90 = scmp.ne.s32.totalorder %s75, %s89
      %p91 = scmp.eq.s32.totalorder %s28, 0
      %p92 = por %p90, %p91
      %s93 = ssub.s32 %s22, %s29
      %p94 = scmp.eq.s32.totalorder %s93, 0
      %s96 = sadd.s32 %s95, 1
      %s97 = scalar_select %p94, %s95, %s96
      %p100 = pneg %p94
      %p101 = scmp.eq.s32.totalorder %s22, 1
      %p102 = por %p100, %p101
      %p103 = scmp.ne.s32.totalorder %s95, %s98
      %p104 = scmp.eq.s32.totalorder %s22, 0
      %p105 = por %p103, %p104
      %p106 = scmp.ne.s32.totalorder %s95, %s98
      %p107 = scmp.eq.s32.totalorder %s27, 1
      %p108 = por %p106, %p107
      %p109 = scmp.ne.s32.totalorder %s98, %s99
      %p110 = scmp.eq.s32.totalorder %s27, 0
      %p111 = por %p109, %p110
      %p112 = scmp.ne.s32.totalorder %s98, %s99
      %p113 = scmp.eq.s32.totalorder %s28, 1
      %p114 = por %p112, %p113
      %p116 = scmp.ne.s32.totalorder %s99, %s115
      %p117 = scmp.eq.s32.totalorder %s28, 0
      %p118 = por %p116, %p117
      %s119 = ssub.s32 %s22, %s29
      %p120 = scmp.eq.s32.totalorder %s119, 0
      %s122 = sadd.s32 %s121, 1
      %s123 = scalar_select %p120, %s121, %s122
      %p126 = pneg %p120
      %p127 = scmp.eq.s32.totalorder %s22, 1
      %p128 = por %p126, %p127
      %p129 = scmp.ne.s32.totalorder %s121, %s124
      %p130 = scmp.eq.s32.totalorder %s22, 0
      %p131 = por %p129, %p130
      %p132 = scmp.ne.s32.totalorder %s121, %s124
      %p133 = scmp.eq.s32.totalorder %s27, 1
      %p134 = por %p132, %p133
      %p135 = scmp.ne.s32.totalorder %s124, %s125
      %p136 = scmp.eq.s32.totalorder %s27, 0
      %p137 = por %p135, %p136
      %p138 = scmp.ne.s32.totalorder %s124, %s125
      %p139 = scmp.eq.s32.totalorder %s28, 1
      %p140 = por %p138, %p139
      %p142 = scmp.ne.s32.totalorder %s125, %s141
      %p143 = scmp.eq.s32.totalorder %s28, 0
      %p144 = por %p142, %p143
      %s145 = ssub.s32 %s22, %s29
      %p146 = scmp.eq.s32.totalorder %s145, 0
      %s148 = sadd.s32 %s147, 1
      %s149 = scalar_select %p146, %s147, %s148
      %p152 = pneg %p146
      %p153 = scmp.eq.s32.totalorder %s22, 1
      %p154 = por %p152, %p153
      %p155 = scmp.ne.s32.totalorder %s147, %s150
      %p156 = scmp.eq.s32.totalorder %s22, 0
      %p157 = por %p155, %p156
      %p158 = scmp.ne.s32.totalorder %s147, %s150
      %p159 = scmp.eq.s32.totalorder %s27, 1
      %p160 = por %p158, %p159
      %p161 = scmp.ne.s32.totalorder %s150, %s151
      %p162 = scmp.eq.s32.totalorder %s27, 0
      %p163 = por %p161, %p162
      %p164 = scmp.ne.s32.totalorder %s150, %s151
      %p165 = scmp.eq.s32.totalorder %s28, 1
      %p166 = por %p164, %p165
      %p168 = scmp.ne.s32.totalorder %s151, %s167
      %p169 = scmp.eq.s32.totalorder %s28, 0
      %p170 = por %p168, %p169
      %p171 = scmp.le.s32.totalorder 1, %s22
      %p172 = scmp.lt.s32.totalorder %s22, 3
      %p173 = pnand %p171, %p172
      %p174 = pneg %p173
      // Predicated region
      $region9: #{tpu_custom_call.1} parent=5 // pred_check
        _
      $region10: #{tpu_custom_call.1} parent=5 // pred_check_branch
        %176 = sbr.rel (%p173) target = $region12
      $region11: #{tpu_custom_call.1} parent=5 // pred_region
        %s177 = ssub.s32 %s22, 1
        // Predicated region
        $region13: #{tpu_custom_call.1} parent=11 // pred_check
          %p178 = pneg %p43
        $region14: #{tpu_custom_call.1} parent=11 // pred_check_branch
          %180 = sbr.rel (%p178) target = $region16
        $region15: #{tpu_custom_call.1} parent=11 // pred_region
          %s182 = ssub.s32 16, 16
          %183 = vsyncadd [#allocation5], %s182
          %s185 = sshll.u32 %s0, 4
          %s186 = int_to_ptr.vmem [resolvable:$true] %s185
          %188 = dma.vmem_to_smem %s186, 16, [#allocation2], [#allocation5]
        $region16: #{tpu_custom_call.1} parent=11 // pred_fallthru
          _
        // Predicated region
        $region17: #{tpu_custom_call.1} parent=11 // pred_check
          %p189 = pneg %p64
        $region18: #{tpu_custom_call.1} parent=11 // pred_check_branch
          %191 = sbr.rel (%p189) target = $region20
        $region19: #{tpu_custom_call.1} parent=11 // pred_region
          _
        $region20: #{tpu_custom_call.1} parent=11 // pred_fallthru
          _
        // Predicated region
        $region21: #{tpu_custom_call.1} parent=11 // pred_check
          %p192 = pneg %p85
        $region22: #{tpu_custom_call.1} parent=11 // pred_check_branch
          %194 = sbr.rel (%p192) target = $region24
        $region23: #{tpu_custom_call.1} parent=11 // pred_region
          _
        $region24: #{tpu_custom_call.1} parent=11 // pred_fallthru
          _
      $region12: #{tpu_custom_call.1} parent=5 // pred_fallthru
        _
      %p195 = scmp.lt.s32.totalorder %s22, 2
      // Predicated region
      $region25: #{tpu_custom_call.1} parent=5 // pred_check
        %p196 = pneg %p195
      $region26: #{tpu_custom_call.1} parent=5 // pred_check_branch
        %198 = sbr.rel (%p196) target = $region28
      $region27: #{tpu_custom_call.1} parent=5 // pred_region
        // Predicated region
        $region29: #{tpu_custom_call.1} parent=27 // pred_check
          %p199 = pneg %p105
        $region30: #{tpu_custom_call.1} parent=27 // pred_check_branch
          %201 = sbr.rel (%p199) target = $region32
        $region31: #{tpu_custom_call.1} parent=27 // pred_region
          %s202 = sand.u32 %s95, 1
          %s203 = scalar_lea.sflag [#allocation3], %s202
          %s204 = sand.u32 %s95, 1
          %s205 = smul.addr %s204, 128
          %s206 = scalar_lea.vmem [#allocation6], %s205
          %s207 = smul.u32 16, %s22
          %s209 = ssub.s32 2048, 2048
          %210 = vsyncadd %s203, %s209
          %s211 = smul.addr %s207, 128
          %s212 = scalar_lea.hbm %s3, %s211
          %s213 = sshll.u32 %s206, 4
          %s214 = int_to_ptr.vmem [resolvable:$true] %s213
          %219 = dma.hbm_to_vmem [thread:$0]  %s212, 2048, %s214, %s203, 128, 128, 8
        $region32: #{tpu_custom_call.1} parent=27 // pred_fallthru
          _
      $region28: #{tpu_custom_call.1} parent=5 // pred_fallthru
        _
      %p220 = scmp.le.s32.totalorder 1, %s22
      %p221 = scmp.lt.s32.totalorder %s22, 3
      %p222 = pnand %p220, %p221
      %p223 = pneg %p222
      // Predicated region
      $region33: #{tpu_custom_call.1} parent=5 // pred_check
        _
      $region34: #{tpu_custom_call.1} parent=5 // pred_check_branch
        %225 = sbr.rel (%p222) target = $region36
      $region35: #{tpu_custom_call.1} parent=5 // pred_region
        %s226 = ssub.s32 %s22, 1
        // Predicated region
        $region37: #{tpu_custom_call.1} parent=35 // pred_check
          %p227 = pneg %p43
        $region38: #{tpu_custom_call.1} parent=35 // pred_check_branch
          %229 = sbr.rel (%p227) target = $region40
        $region39: #{tpu_custom_call.1} parent=35 // pred_region
          %230 = dma.done [#allocation5], 16
        $region40: #{tpu_custom_call.1} parent=35 // pred_fallthru
          _
        %s231 = sand.u32 %s98, 1
        %s232 = scalar_lea.sflag [#allocation3], %s231
        %s233 = sand.u32 %s98, 1
        %s234 = smul.addr %s233, 128
        %s235 = scalar_lea.vmem [#allocation6], %s234
        // Predicated region
        $region41: #{tpu_custom_call.1} parent=35 // pred_check
          %p236 = pneg %p111
        $region42: #{tpu_custom_call.1} parent=35 // pred_check_branch
          %238 = sbr.rel (%p236) target = $region44
        $region43: #{tpu_custom_call.1} parent=35 // pred_region
          %239 = dma.done %s232, 2048
        $region44: #{tpu_custom_call.1} parent=35 // pred_fallthru
          _
        %240 = sfence
        %p241 = pneg %p43
        %p242 = pneg %p40
        %p243 = pneg %p64
        %p244 = pneg %p61
        %p245 = pneg %p85
        %p246 = pneg %p82
        %s247 = sand.u32 %s98, 1
        %s248 = scalar_lea.sflag [#allocation3], %s247
        %s249 = sand.u32 %s98, 1
        %s250 = smul.addr %s249, 128
        %s251 = scalar_lea.vmem [#allocation6], %s250
        %p252 = pneg %p111
        %p253 = pneg %p108
        %p254 = pneg %p137
        %p255 = pneg %p134
        %s256 = sand.u32 %s124, 1
        %s257 = scalar_lea.sflag [#allocation4], %s256
        %s258 = sand.u32 %s124, 1
        %s259 = smul.addr %s258, 128
        %s260 = scalar_lea.vmem [#allocation7], %s259
        %p261 = pneg %p163
        %p262 = pneg %p160
        %s263 = sand.u32 %s150, 1
        %s264 = scalar_lea.sflag [#allocation9], %s263
        %s265 = sand.u32 %s150, 1
        %s266 = smul.addr %s265, 4
        %s267 = scalar_lea.vmem [#allocation8], %s266
        %s268 = smul.u32 16, %s27
        %s269 = smul.u32 16, %s27
        %s270 = sld [smem:[#allocation2]]
        %s271 = sld [smem:[#allocation2 + $0x1]]
        %v272 = vld [vmem:[%s235] sm:$0xff]
        %v273 = vld [vmem:[%s235 + $0x8] sm:$0xff]
        %v274 = vld [vmem:[%s235 + $0x10] sm:$0xff]
        %v275 = vld [vmem:[%s235 + $0x18] sm:$0xff]
        %v276 = vld [vmem:[%s235 + $0x20] sm:$0xff]
        %v277 = vld [vmem:[%s235 + $0x28] sm:$0xff]
        %v278 = vld [vmem:[%s235 + $0x30] sm:$0xff]
        %v279 = vld [vmem:[%s235 + $0x38] sm:$0xff]
        %v280 = vld [vmem:[%s235 + $0x40] sm:$0xff]
        %v281 = vld [vmem:[%s235 + $0x48] sm:$0xff]
        %v282 = vld [vmem:[%s235 + $0x50] sm:$0xff]
        %v283 = vld [vmem:[%s235 + $0x58] sm:$0xff]
        %v284 = vld [vmem:[%s235 + $0x60] sm:$0xff]
        %v285 = vld [vmem:[%s235 + $0x68] sm:$0xff]
        %v286 = vld [vmem:[%s235 + $0x70] sm:$0xff]
        %v287 = vld [vmem:[%s235 + $0x78] sm:$0xff]
        %v288 = vld [vmem:[%s1] sm:$0xff]
        %v289 = vld [vmem:[%s1 + $0x8] sm:$0xff]
        %v290 = vld [vmem:[%s1 + $0x10] sm:$0xff]
        %v291 = vld [vmem:[%s1 + $0x18] sm:$0xff]
        %v292 = vld [vmem:[%s1 + $0x20] sm:$0xff]
        %v293 = vld [vmem:[%s1 + $0x28] sm:$0xff]
        %v294 = vld [vmem:[%s1 + $0x30] sm:$0xff]
        %v295 = vld [vmem:[%s1 + $0x38] sm:$0xff]
        %v296 = vld [vmem:[%s1 + $0x40] sm:$0xff]
        %v297 = vld [vmem:[%s1 + $0x48] sm:$0xff]
        %v298 = vld [vmem:[%s1 + $0x50] sm:$0xff]
        %v299 = vld [vmem:[%s1 + $0x58] sm:$0xff]
        %v300 = vld [vmem:[%s1 + $0x60] sm:$0xff]
        %v301 = vld [vmem:[%s1 + $0x68] sm:$0xff]
        %v302 = vld [vmem:[%s1 + $0x70] sm:$0xff]
        %v303 = vld [vmem:[%s1 + $0x78] sm:$0xff]
        %304 = vmatprep.subr.mxu0 0.0
        %v305 = vand.u32 %v303, 4294901760
        %306 = vmatpush1.msra.mxu0 %v305
        %307 = vmatprep.subr.mxu0 0.0
        %v308 = vand.u32 %v302, 4294901760
        %309 = vmatpush1.msra.mxu0 %v308
        %310 = vmatprep.subr.mxu0 0.0
        %v311 = vand.u32 %v301, 4294901760
        %312 = vmatpush1.msra.mxu0 %v311
        %313 = vmatprep.subr.mxu0 0.0
        %v314 = vand.u32 %v300, 4294901760
        %315 = vmatpush1.msra.mxu0 %v314
        %316 = vmatprep.subr.mxu0 0.0
        %v317 = vand.u32 %v299, 4294901760
        %318 = vmatpush1.msra.mxu0 %v317
        %319 = vmatprep.subr.mxu0 0.0
        %v320 = vand.u32 %v298, 4294901760
        %321 = vmatpush1.msra.mxu0 %v320
        %322 = vmatprep.subr.mxu0 0.0
        %v323 = vand.u32 %v297, 4294901760
        %324 = vmatpush1.msra.mxu0 %v323
        %325 = vmatprep.subr.mxu0 0.0
        %v326 = vand.u32 %v296, 4294901760
        %327 = vmatpush1.msra.mxu0 %v326
        %328 = vmatprep.subr.mxu0 0.0
        %v329 = vand.u32 %v295, 4294901760
        %330 = vmatpush1.msra.mxu0 %v329
        %331 = vmatprep.subr.mxu0 0.0
        %v332 = vand.u32 %v294, 4294901760
        %333 = vmatpush1.msra.mxu0 %v332
        %334 = vmatprep.subr.mxu0 0.0
        %v335 = vand.u32 %v293, 4294901760
        %336 = vmatpush1.msra.mxu0 %v335
        %337 = vmatprep.subr.mxu0 0.0
        %v338 = vand.u32 %v292, 4294901760
        %339 = vmatpush1.msra.mxu0 %v338
        %340 = vmatprep.subr.mxu0 0.0
        %v341 = vand.u32 %v291, 4294901760
        %342 = vmatpush1.msra.mxu0 %v341
        %343 = vmatprep.subr.mxu0 0.0
        %v344 = vand.u32 %v290, 4294901760
        %345 = vmatpush1.msra.mxu0 %v344
        %346 = vmatprep.subr.mxu0 0.0
        %v347 = vand.u32 %v289, 4294901760
        %348 = vmatpush1.msra.mxu0 %v347
        %349 = vmatprep.subr.mxu0 0.0
        %v350 = vand.u32 %v288, 4294901760
        %351 = vmatpush1.msra.mxu0 %v350
        %352 = vmatprep.subr.mxu0 0.0
        %353 = vmatpush2.msra.mxu0 0.0
        %354 = vmatprep.subr.mxu0 0.0
        %355 = vmatpush2.msra.mxu0 0.0
        %356 = vmatprep.subr.mxu0 0.0
        %357 = vmatpush2.msra.mxu0 0.0
        %358 = vmatprep.subr.mxu0 0.0
        %359 = vmatpush2.msra.mxu0 0.0
        %360 = vmatprep.subr.mxu0 0.0
        %361 = vmatpush2.msra.mxu0 0.0
        %362 = vmatprep.subr.mxu0 0.0
        %363 = vmatpush2.msra.mxu0 0.0
        %364 = vmatprep.subr.mxu0 0.0
        %365 = vmatpush2.msra.mxu0 0.0
        %366 = vmatprep.subr.mxu0 0.0
        %367 = vmatpush2.msra.mxu0 0.0
        %368 = vmatprep.subr.mxu0 0.0
        %369 = vmatpush2.msra.mxu0 0.0
        %370 = vmatprep.subr.mxu0 0.0
        %371 = vmatpush2.msra.mxu0 0.0
        %372 = vmatprep.subr.mxu0 0.0
        %373 = vmatpush2.msra.mxu0 0.0
        %374 = vmatprep.subr.mxu0 0.0
        %375 = vmatpush2.msra.mxu0 0.0
        %376 = vmatprep.subr.mxu0 0.0
        %377 = vmatpush2.msra.mxu0 0.0
        %378 = vmatprep.subr.mxu0 0.0
        %379 = vmatpush2.msra.mxu0 0.0
        %380 = vmatprep.subr.mxu0 0.0
        %381 = vmatpush2.msra.mxu0 0.0
        %382 = vmatprep.subr.mxu0 0.0
        %383 = vmatpush2.msra.mxu0 0.0
        %384 = vmatprep.mubr.f32.mxu0 0.0
        %v385 = vand.u32 %v272, 4294901760
        %v386 = vsub.f32 %v272, %v385
        %v387 = vand.u32 %v386, 4294901760
        %v388 = vsub.f32 %v386, %v387
        %v389 = vand.u32 %v388, 4294901760
        %390 = vmatmul.mubr.f32.gmra.mxu0 %v389
        %v391 = vpop.f32.mrf.mxu0
        %v392 = vadd.f32 0.0, %v391
        %v393 = vpop.f32.mrf.mxu0
        %394 = vmatprep.mubr.f32.mxu0 0.0
        %v395 = vand.u32 %v273, 4294901760
        %v396 = vsub.f32 %v273, %v395
        %v397 = vand.u32 %v396, 4294901760
        %v398 = vsub.f32 %v396, %v397
        %v399 = vand.u32 %v398, 4294901760
        %400 = vmatmul.mubr.f32.gmra.mxu0 %v399
        %v401 = vpop.f32.mrf.mxu0
        %v402 = vadd.f32 0.0, %v401
        %v403 = vpop.f32.mrf.mxu0
        %404 = vmatprep.mubr.f32.mxu0 0.0
        %v405 = vand.u32 %v274, 4294901760
        %v406 = vsub.f32 %v274, %v405
        %v407 = vand.u32 %v406, 4294901760
        %v408 = vsub.f32 %v406, %v407
        %v409 = vand.u32 %v408, 4294901760
        %410 = vmatmul.mubr.f32.gmra.mxu0 %v409
        %v411 = vpop.f32.mrf.mxu0
        %v412 = vadd.f32 0.0, %v411
        %v413 = vpop.f32.mrf.mxu0
        %414 = vmatprep.mubr.f32.mxu0 0.0
        %v415 = vand.u32 %v275, 4294901760
        %v416 = vsub.f32 %v275, %v415
        %v417 = vand.u32 %v416, 4294901760
        %v418 = vsub.f32 %v416, %v417
        %v419 = vand.u32 %v418, 4294901760
        %420 = vmatmul.mubr.f32.gmra.mxu0 %v419
        %v421 = vpop.f32.mrf.mxu0
        %v422 = vadd.f32 0.0, %v421
        %v423 = vpop.f32.mrf.mxu0
        %424 = vmatprep.mubr.f32.mxu0 0.0
        %v425 = vand.u32 %v276, 4294901760
        %v426 = vsub.f32 %v276, %v425
        %v427 = vand.u32 %v426, 4294901760
        %v428 = vsub.f32 %v426, %v427
        %v429 = vand.u32 %v428, 4294901760
        %430 = vmatmul.mubr.f32.gmra.mxu0 %v429
        %v431 = vpop.f32.mrf.mxu0
        %v432 = vadd.f32 0.0, %v431
        %v433 = vpop.f32.mrf.mxu0
        %434 = vmatprep.mubr.f32.mxu0 0.0
        %v435 = vand.u32 %v277, 4294901760
        %v436 = vsub.f32 %v277, %v435
        %v437 = vand.u32 %v436, 4294901760
        %v438 = vsub.f32 %v436, %v437
        %v439 = vand.u32 %v438, 4294901760
        %440 = vmatmul.mubr.f32.gmra.mxu0 %v439
        %v441 = vpop.f32.mrf.mxu0
        %v442 = vadd.f32 0.0, %v441
        %v443 = vpop.f32.mrf.mxu0
        %444 = vmatprep.mubr.f32.mxu0 0.0
        %v445 = vand.u32 %v278, 4294901760
        %v446 = vsub.f32 %v278, %v445
        %v447 = vand.u32 %v446, 4294901760
        %v448 = vsub.f32 %v446, %v447
        %v449 = vand.u32 %v448, 4294901760
        %450 = vmatmul.mubr.f32.gmra.mxu0 %v449
        %v451 = vpop.f32.mrf.mxu0
        %v452 = vadd.f32 0.0, %v451
        %v453 = vpop.f32.mrf.mxu0
        %454 = vmatprep.mubr.f32.mxu0 0.0
        %v455 = vand.u32 %v279, 4294901760
        %v456 = vsub.f32 %v279, %v455
        %v457 = vand.u32 %v456, 4294901760
        %v458 = vsub.f32 %v456, %v457
        %v459 = vand.u32 %v458, 4294901760
        %460 = vmatmul.mubr.f32.gmra.mxu0 %v459
        %v461 = vpop.f32.mrf.mxu0
        %v462 = vadd.f32 0.0, %v461
        %v463 = vpop.f32.mrf.mxu0
        %464 = vmatprep.mubr.f32.mxu0 0.0
        %v465 = vand.u32 %v280, 4294901760
        %v466 = vsub.f32 %v280, %v465
        %v467 = vand.u32 %v466, 4294901760
        %v468 = vsub.f32 %v466, %v467
        %v469 = vand.u32 %v468, 4294901760
        %470 = vmatmul.mubr.f32.gmra.mxu0 %v469
        %v471 = vpop.f32.mrf.mxu0
        %v472 = vadd.f32 0.0, %v471
        %v473 = vpop.f32.mrf.mxu0
        %474 = vmatprep.mubr.f32.mxu0 0.0
        %v475 = vand.u32 %v281, 4294901760
        %v476 = vsub.f32 %v281, %v475
        %v477 = vand.u32 %v476, 4294901760
        %v478 = vsub.f32 %v476, %v477
        %v479 = vand.u32 %v478, 4294901760
        %480 = vmatmul.mubr.f32.gmra.mxu0 %v479
        %v481 = vpop.f32.mrf.mxu0
        %v482 = vadd.f32 0.0, %v481
        %v483 = vpop.f32.mrf.mxu0
        %484 = vmatprep.mubr.f32.mxu0 0.0
        %v485 = vand.u32 %v282, 4294901760
        %v486 = vsub.f32 %v282, %v485
        %v487 = vand.u32 %v486, 4294901760
        %v488 = vsub.f32 %v486, %v487
        %v489 = vand.u32 %v488, 4294901760
        %490 = vmatmul.mubr.f32.gmra.mxu0 %v489
        %v491 = vpop.f32.mrf.mxu0
        %v492 = vadd.f32 0.0, %v491
        %v493 = vpop.f32.mrf.mxu0
        %494 = vmatprep.mubr.f32.mxu0 0.0
        %v495 = vand.u32 %v283, 4294901760
        %v496 = vsub.f32 %v283, %v495
        %v497 = vand.u32 %v496, 4294901760
        %v498 = vsub.f32 %v496, %v497
        %v499 = vand.u32 %v498, 4294901760
        %500 = vmatmul.mubr.f32.gmra.mxu0 %v499
        %v501 = vpop.f32.mrf.mxu0
        %v502 = vadd.f32 0.0, %v501
        %v503 = vpop.f32.mrf.mxu0
        %504 = vmatprep.mubr.f32.mxu0 0.0
        %v505 = vand.u32 %v284, 4294901760
        %v506 = vsub.f32 %v284, %v505
        %v507 = vand.u32 %v506, 4294901760
        %v508 = vsub.f32 %v506, %v507
        %v509 = vand.u32 %v508, 4294901760
        %510 = vmatmul.mubr.f32.gmra.mxu0 %v509
        %v511 = vpop.f32.mrf.mxu0
        %v512 = vadd.f32 0.0, %v511
        %v513 = vpop.f32.mrf.mxu0
        %514 = vmatprep.mubr.f32.mxu0 0.0
        %v515 = vand.u32 %v285, 4294901760
        %v516 = vsub.f32 %v285, %v515
        %v517 = vand.u32 %v516, 4294901760
        %v518 = vsub.f32 %v516, %v517
        %v519 = vand.u32 %v518, 4294901760
        %520 = vmatmul.mubr.f32.gmra.mxu0 %v519
        %v521 = vpop.f32.mrf.mxu0
        %v522 = vadd.f32 0.0, %v521
        %v523 = vpop.f32.mrf.mxu0
        %524 = vmatprep.mubr.f32.mxu0 0.0
        %v525 = vand.u32 %v286, 4294901760
        %v526 = vsub.f32 %v286, %v525
        %v527 = vand.u32 %v526, 4294901760
        %v528 = vsub.f32 %v526, %v527
        %v529 = vand.u32 %v528, 4294901760
        %530 = vmatmul.mubr.f32.gmra.mxu0 %v529
        %v531 = vpop.f32.mrf.mxu0
        %v532 = vadd.f32 0.0, %v531
        %v533 = vpop.f32.mrf.mxu0
        %534 = vmatprep.mubr.f32.mxu0 0.0
        %v535 = vand.u32 %v287, 4294901760
        %v536 = vsub.f32 %v287, %v535
        %v537 = vand.u32 %v536, 4294901760
        %v538 = vsub.f32 %v536, %v537
        %v539 = vand.u32 %v538, 4294901760
        %540 = vmatmul.mubr.f32.gmra.mxu0 %v539
        %v541 = vpop.f32.mrf.mxu0
        %v542 = vadd.f32 0.0, %v541
        %v543 = vpop.f32.mrf.mxu0
        %544 = vdwg.mxu0
        %545 = vmatprep.subr.mxu0 0.0
        %v546 = vand.u32 %v303, 4294901760
        %v547 = vsub.f32 %v303, %v546
        %v548 = vand.u32 %v547, 4294901760
        %v549 = vsub.f32 %v547, %v548
        %v550 = vand.u32 %v549, 4294901760
        %551 = vmatpush1.msra.mxu0 %v550
        %552 = vmatprep.subr.mxu0 0.0
        %v553 = vand.u32 %v302, 4294901760
        %v554 = vsub.f32 %v302, %v553
        %v555 = vand.u32 %v554, 4294901760
        %v556 = vsub.f32 %v554, %v555
        %v557 = vand.u32 %v556, 4294901760
        %558 = vmatpush1.msra.mxu0 %v557
        %559 = vmatprep.subr.mxu0 0.0
        %v560 = vand.u32 %v301, 4294901760
        %v561 = vsub.f32 %v301, %v560
        %v562 = vand.u32 %v561, 4294901760
        %v563 = vsub.f32 %v561, %v562
        %v564 = vand.u32 %v563, 4294901760
        %565 = vmatpush1.msra.mxu0 %v564
        %566 = vmatprep.subr.mxu0 0.0
        %v567 = vand.u32 %v300, 4294901760
        %v568 = vsub.f32 %v300, %v567
        %v569 = vand.u32 %v568, 4294901760
        %v570 = vsub.f32 %v568, %v569
        %v571 = vand.u32 %v570, 4294901760
        %572 = vmatpush1.msra.mxu0 %v571
        %573 = vmatprep.subr.mxu0 0.0
        %v574 = vand.u32 %v299, 4294901760
        %v575 = vsub.f32 %v299, %v574
        %v576 = vand.u32 %v575, 4294901760
        %v577 = vsub.f32 %v575, %v576
        %v578 = vand.u32 %v577, 4294901760
        %579 = vmatpush1.msra.mxu0 %v578
        %580 = vmatprep.subr.mxu0 0.0
        %v581 = vand.u32 %v298, 4294901760
        %v582 = vsub.f32 %v298, %v581
        %v583 = vand.u32 %v582, 4294901760
        %v584 = vsub.f32 %v582, %v583
        %v585 = vand.u32 %v584, 4294901760
        %586 = vmatpush1.msra.mxu0 %v585
        %587 = vmatprep.subr.mxu0 0.0
        %v588 = vand.u32 %v297, 4294901760
        %v589 = vsub.f32 %v297, %v588
        %v590 = vand.u32 %v589, 4294901760
        %v591 = vsub.f32 %v589, %v590
        %v592 = vand.u32 %v591, 4294901760
        %593 = vmatpush1.msra.mxu0 %v592
        %594 = vmatprep.subr.mxu0 0.0
        %v595 = vand.u32 %v296, 4294901760
        %v596 = vsub.f32 %v296, %v595
        %v597 = vand.u32 %v596, 4294901760
        %v598 = vsub.f32 %v596, %v597
        %v599 = vand.u32 %v598, 4294901760
        %600 = vmatpush1.msra.mxu0 %v599
        %601 = vmatprep.subr.mxu0 0.0
        %v602 = vand.u32 %v295, 4294901760
        %v603 = vsub.f32 %v295, %v602
        %v604 = vand.u32 %v603, 4294901760
        %v605 = vsub.f32 %v603, %v604
        %v606 = vand.u32 %v605, 4294901760
        %607 = vmatpush1.msra.mxu0 %v606
        %608 = vmatprep.subr.mxu0 0.0
        %v609 = vand.u32 %v294, 4294901760
        %v610 = vsub.f32 %v294, %v609
        %v611 = vand.u32 %v610, 4294901760
        %v612 = vsub.f32 %v610, %v611
        %v613 = vand.u32 %v612, 4294901760
        %614 = vmatpush1.msra.mxu0 %v613
        %615 = vmatprep.subr.mxu0 0.0
        %v616 = vand.u32 %v293, 4294901760
        %v617 = vsub.f32 %v293, %v616
        %v618 = vand.u32 %v617, 4294901760
        %v619 = vsub.f32 %v617, %v618
        %v620 = vand.u32 %v619, 4294901760
        %621 = vmatpush1.msra.mxu0 %v620
        %622 = vmatprep.subr.mxu0 0.0
        %v623 = vand.u32 %v292, 4294901760
        %v624 = vsub.f32 %v292, %v623
        %v625 = vand.u32 %v624, 4294901760
        %v626 = vsub.f32 %v624, %v625
        %v627 = vand.u32 %v626, 4294901760
        %628 = vmatpush1.msra.mxu0 %v627
        %629 = vmatprep.subr.mxu0 0.0
        %v630 = vand.u32 %v291, 4294901760
        %v631 = vsub.f32 %v291, %v630
        %v632 = vand.u32 %v631, 4294901760
        %v633 = vsub.f32 %v631, %v632
        %v634 = vand.u32 %v633, 4294901760
        %635 = vmatpush1.msra.mxu0 %v634
        %636 = vmatprep.subr.mxu0 0.0
        %v637 = vand.u32 %v290, 4294901760
        %v638 = vsub.f32 %v290, %v637
        %v639 = vand.u32 %v638, 4294901760
        %v640 = vsub.f32 %v638, %v639
        %v641 = vand.u32 %v640, 4294901760
        %642 = vmatpush1.msra.mxu0 %v641
        %643 = vmatprep.subr.mxu0 0.0
        %v644 = vand.u32 %v289, 4294901760
        %v645 = vsub.f32 %v289, %v644
        %v646 = vand.u32 %v645, 4294901760
        %v647 = vsub.f32 %v645, %v646
        %v648 = vand.u32 %v647, 4294901760
        %649 = vmatpush1.msra.mxu0 %v648
        %650 = vmatprep.subr.mxu0 0.0
        %v651 = vand.u32 %v288, 4294901760
        %v652 = vsub.f32 %v288, %v651
        %v653 = vand.u32 %v652, 4294901760
        %v654 = vsub.f32 %v652, %v653
        %v655 = vand.u32 %v654, 4294901760
        %656 = vmatpush1.msra.mxu0 %v655
        %657 = vmatprep.subr.mxu0 0.0
        %658 = vmatpush2.msra.mxu0 0.0
        %659 = vmatprep.subr.mxu0 0.0
        %660 = vmatpush2.msra.mxu0 0.0
        %661 = vmatprep.subr.mxu0 0.0
        %662 = vmatpush2.msra.mxu0 0.0
        %663 = vmatprep.subr.mxu0 0.0
        %664 = vmatpush2.msra.mxu0 0.0
        %665 = vmatprep.subr.mxu0 0.0
        %666 = vmatpush2.msra.mxu0 0.0
        %667 = vmatprep.subr.mxu0 0.0
        %668 = vmatpush2.msra.mxu0 0.0
        %669 = vmatprep.subr.mxu0 0.0
        %670 = vmatpush2.msra.mxu0 0.0
        %671 = vmatprep.subr.mxu0 0.0
        %672 = vmatpush2.msra.mxu0 0.0
        %673 = vmatprep.subr.mxu0 0.0
        %674 = vmatpush2.msra.mxu0 0.0
        %675 = vmatprep.subr.mxu0 0.0
        %676 = vmatpush2.msra.mxu0 0.0
        %677 = vmatprep.subr.mxu0 0.0
        %678 = vmatpush2.msra.mxu0 0.0
        %679 = vmatprep.subr.mxu0 0.0
        %680 = vmatpush2.msra.mxu0 0.0
        %681 = vmatprep.subr.mxu0 0.0
        %682 = vmatpush2.msra.mxu0 0.0
        %683 = vmatprep.subr.mxu0 0.0
        %684 = vmatpush2.msra.mxu0 0.0
        %685 = vmatprep.subr.mxu0 0.0
        %686 = vmatpush2.msra.mxu0 0.0
        %687 = vmatprep.subr.mxu0 0.0
        %688 = vmatpush2.msra.mxu0 0.0
        %689 = vmatprep.mubr.f32.mxu0 0.0
        %v690 = vand.u32 %v272, 4294901760
        %691 = vmatmul.mubr.f32.gmra.mxu0 %v690
        %v692 = vpop.f32.mrf.mxu0
        %v693 = vadd.f32 %v392, %v692
        %v694 = vpop.f32.mrf.mxu0
        %695 = vmatprep.mubr.f32.mxu0 0.0
        %v696 = vand.u32 %v273, 4294901760
        %697 = vmatmul.mubr.f32.gmra.mxu0 %v696
        %v698 = vpop.f32.mrf.mxu0
        %v699 = vadd.f32 %v402, %v698
        %v700 = vpop.f32.mrf.mxu0
        %701 = vmatprep.mubr.f32.mxu0 0.0
        %v702 = vand.u32 %v274, 4294901760
        %703 = vmatmul.mubr.f32.gmra.mxu0 %v702
        %v704 = vpop.f32.mrf.mxu0
        %v705 = vadd.f32 %v412, %v704
        %v706 = vpop.f32.mrf.mxu0
        %707 = vmatprep.mubr.f32.mxu0 0.0
        %v708 = vand.u32 %v275, 4294901760
        %709 = vmatmul.mubr.f32.gmra.mxu0 %v708
        %v710 = vpop.f32.mrf.mxu0
        %v711 = vadd.f32 %v422, %v710
        %v712 = vpop.f32.mrf.mxu0
        %713 = vmatprep.mubr.f32.mxu0 0.0
        %v714 = vand.u32 %v276, 4294901760
        %715 = vmatmul.mubr.f32.gmra.mxu0 %v714
        %v716 = vpop.f32.mrf.mxu0
        %v717 = vadd.f32 %v432, %v716
        %v718 = vpop.f32.mrf.mxu0
        %719 = vmatprep.mubr.f32.mxu0 0.0
        %v720 = vand.u32 %v277, 4294901760
        %721 = vmatmul.mubr.f32.gmra.mxu0 %v720
        %v722 = vpop.f32.mrf.mxu0
        %v723 = vadd.f32 %v442, %v722
        %v724 = vpop.f32.mrf.mxu0
        %725 = vmatprep.mubr.f32.mxu0 0.0
        %v726 = vand.u32 %v278, 4294901760
        %727 = vmatmul.mubr.f32.gmra.mxu0 %v726
        %v728 = vpop.f32.mrf.mxu0
        %v729 = vadd.f32 %v452, %v728
        %v730 = vpop.f32.mrf.mxu0
        %731 = vmatprep.mubr.f32.mxu0 0.0
        %v732 = vand.u32 %v279, 4294901760
        %733 = vmatmul.mubr.f32.gmra.mxu0 %v732
        %v734 = vpop.f32.mrf.mxu0
        %v735 = vadd.f32 %v462, %v734
        %v736 = vpop.f32.mrf.mxu0
        %737 = vmatprep.mubr.f32.mxu0 0.0
        %v738 = vand.u32 %v280, 4294901760
        %739 = vmatmul.mubr.f32.gmra.mxu0 %v738
        %v740 = vpop.f32.mrf.mxu0
        %v741 = vadd.f32 %v472, %v740
        %v742 = vpop.f32.mrf.mxu0
        %743 = vmatprep.mubr.f32.mxu0 0.0
        %v744 = vand.u32 %v281, 4294901760
        %745 = vmatmul.mubr.f32.gmra.mxu0 %v744
        %v746 = vpop.f32.mrf.mxu0
        %v747 = vadd.f32 %v482, %v746
        %v748 = vpop.f32.mrf.mxu0
        %749 = vmatprep.mubr.f32.mxu0 0.0
        %v750 = vand.u32 %v282, 4294901760
        %751 = vmatmul.mubr.f32.gmra.mxu0 %v750
        %v752 = vpop.f32.mrf.mxu0
        %v753 = vadd.f32 %v492, %v752
        %v754 = vpop.f32.mrf.mxu0
        %755 = vmatprep.mubr.f32.mxu0 0.0
        %v756 = vand.u32 %v283, 4294901760
        %757 = vmatmul.mubr.f32.gmra.mxu0 %v756
        %v758 = vpop.f32.mrf.mxu0
        %v759 = vadd.f32 %v502, %v758
        %v760 = vpop.f32.mrf.mxu0
        %761 = vmatprep.mubr.f32.mxu0 0.0
        %v762 = vand.u32 %v284, 4294901760
        %763 = vmatmul.mubr.f32.gmra.mxu0 %v762
        %v764 = vpop.f32.mrf.mxu0
        %v765 = vadd.f32 %v512, %v764
        %v766 = vpop.f32.mrf.mxu0
        %767 = vmatprep.mubr.f32.mxu0 0.0
        %v768 = vand.u32 %v285, 4294901760
        %769 = vmatmul.mubr.f32.gmra.mxu0 %v768
        %v770 = vpop.f32.mrf.mxu0
        %v771 = vadd.f32 %v522, %v770
        %v772 = vpop.f32.mrf.mxu0
        %773 = vmatprep.mubr.f32.mxu0 0.0
        %v774 = vand.u32 %v286, 4294901760
        %775 = vmatmul.mubr.f32.gmra.mxu0 %v774
        %v776 = vpop.f32.mrf.mxu0
        %v777 = vadd.f32 %v532, %v776
        %v778 = vpop.f32.mrf.mxu0
        %779 = vmatprep.mubr.f32.mxu0 0.0
        %v780 = vand.u32 %v287, 4294901760
        %781 = vmatmul.mubr.f32.gmra.mxu0 %v780
        %v782 = vpop.f32.mrf.mxu0
        %v783 = vadd.f32 %v542, %v782
        %v784 = vpop.f32.mrf.mxu0
        %785 = vdwg.mxu0
        %786 = vmatprep.subr.mxu0 0.0
        %v787 = vand.u32 %v303, 4294901760
        %v788 = vsub.f32 %v303, %v787
        %789 = vmatpush1.msra.mxu0 %v788
        %790 = vmatprep.subr.mxu0 0.0
        %v791 = vand.u32 %v302, 4294901760
        %v792 = vsub.f32 %v302, %v791
        %793 = vmatpush1.msra.mxu0 %v792
        %794 = vmatprep.subr.mxu0 0.0
        %v795 = vand.u32 %v301, 4294901760
        %v796 = vsub.f32 %v301, %v795
        %797 = vmatpush1.msra.mxu0 %v796
        %798 = vmatprep.subr.mxu0 0.0
        %v799 = vand.u32 %v300, 4294901760
        %v800 = vsub.f32 %v300, %v799
        %801 = vmatpush1.msra.mxu0 %v800
        %802 = vmatprep.subr.mxu0 0.0
        %v803 = vand.u32 %v299, 4294901760
        %v804 = vsub.f32 %v299, %v803
        %805 = vmatpush1.msra.mxu0 %v804
        %806 = vmatprep.subr.mxu0 0.0
        %v807 = vand.u32 %v298, 4294901760
        %v808 = vsub.f32 %v298, %v807
        %809 = vmatpush1.msra.mxu0 %v808
        %810 = vmatprep.subr.mxu0 0.0
        %v811 = vand.u32 %v297, 4294901760
        %v812 = vsub.f32 %v297, %v811
        %813 = vmatpush1.msra.mxu0 %v812
        %814 = vmatprep.subr.mxu0 0.0
        %v815 = vand.u32 %v296, 4294901760
        %v816 = vsub.f32 %v296, %v815
        %817 = vmatpush1.msra.mxu0 %v816
        %818 = vmatprep.subr.mxu0 0.0
        %v819 = vand.u32 %v295, 4294901760
        %v820 = vsub.f32 %v295, %v819
        %821 = vmatpush1.msra.mxu0 %v820
        %822 = vmatprep.subr.mxu0 0.0
        %v823 = vand.u32 %v294, 4294901760
        %v824 = vsub.f32 %v294, %v823
        %825 = vmatpush1.msra.mxu0 %v824
        %826 = vmatprep.subr.mxu0 0.0
        %v827 = vand.u32 %v293, 4294901760
        %v828 = vsub.f32 %v293, %v827
        %829 = vmatpush1.msra.mxu0 %v828
        %830 = vmatprep.subr.mxu0 0.0
        %v831 = vand.u32 %v292, 4294901760
        %v832 = vsub.f32 %v292, %v831
        %833 = vmatpush1.msra.mxu0 %v832
        %834 = vmatprep.subr.mxu0 0.0
        %v835 = vand.u32 %v291, 4294901760
        %v836 = vsub.f32 %v291, %v835
        %837 = vmatpush1.msra.mxu0 %v836
        %838 = vmatprep.subr.mxu0 0.0
        %v839 = vand.u32 %v290, 4294901760
        %v840 = vsub.f32 %v290, %v839
        %841 = vmatpush1.msra.mxu0 %v840
        %842 = vmatprep.subr.mxu0 0.0
        %v843 = vand.u32 %v289, 4294901760
        %v844 = vsub.f32 %v289, %v843
        %845 = vmatpush1.msra.mxu0 %v844
        %846 = vmatprep.subr.mxu0 0.0
        %v847 = vand.u32 %v288, 4294901760
        %v848 = vsub.f32 %v288, %v847
        %849 = vmatpush1.msra.mxu0 %v848
        %850 = vmatprep.subr.mxu0 0.0
        %851 = vmatpush2.msra.mxu0 0.0
        %852 = vmatprep.subr.mxu0 0.0
        %853 = vmatpush2.msra.mxu0 0.0
        %854 = vmatprep.subr.mxu0 0.0
        %855 = vmatpush2.msra.mxu0 0.0
        %856 = vmatprep.subr.mxu0 0.0
        %857 = vmatpush2.msra.mxu0 0.0
        %858 = vmatprep.subr.mxu0 0.0
        %859 = vmatpush2.msra.mxu0 0.0
        %860 = vmatprep.subr.mxu0 0.0
        %861 = vmatpush2.msra.mxu0 0.0
        %862 = vmatprep.subr.mxu0 0.0
        %863 = vmatpush2.msra.mxu0 0.0
        %864 = vmatprep.subr.mxu0 0.0
        %865 = vmatpush2.msra.mxu0 0.0
        %866 = vmatprep.subr.mxu0 0.0
        %867 = vmatpush2.msra.mxu0 0.0
        %868 = vmatprep.subr.mxu0 0.0
        %869 = vmatpush2.msra.mxu0 0.0
        %870 = vmatprep.subr.mxu0 0.0
        %871 = vmatpush2.msra.mxu0 0.0
        %872 = vmatprep.subr.mxu0 0.0
        %873 = vmatpush2.msra.mxu0 0.0
        %874 = vmatprep.subr.mxu0 0.0
        %875 = vmatpush2.msra.mxu0 0.0
        %876 = vmatprep.subr.mxu0 0.0
        %877 = vmatpush2.msra.mxu0 0.0
        %878 = vmatprep.subr.mxu0 0.0
        %879 = vmatpush2.msra.mxu0 0.0
        %880 = vmatprep.subr.mxu0 0.0
        %881 = vmatpush2.msra.mxu0 0.0
        %882 = vmatprep.mubr.f32.mxu0 0.0
        %v883 = vand.u32 %v272, 4294901760
        %v884 = vsub.f32 %v272, %v883
        %885 = vmatmul.mubr.f32.gmra.mxu0 %v884
        %v886 = vpop.f32.mrf.mxu0
        %v887 = vadd.f32 %v693, %v886
        %v888 = vpop.f32.mrf.mxu0
        %889 = vmatprep.mubr.f32.mxu0 0.0
        %v890 = vand.u32 %v273, 4294901760
        %v891 = vsub.f32 %v273, %v890
        %892 = vmatmul.mubr.f32.gmra.mxu0 %v891
        %v893 = vpop.f32.mrf.mxu0
        %v894 = vadd.f32 %v699, %v893
        %v895 = vpop.f32.mrf.mxu0
        %896 = vmatprep.mubr.f32.mxu0 0.0
        %v897 = vand.u32 %v274, 4294901760
        %v898 = vsub.f32 %v274, %v897
        %899 = vmatmul.mubr.f32.gmra.mxu0 %v898
        %v900 = vpop.f32.mrf.mxu0
        %v901 = vadd.f32 %v705, %v900
        %v902 = vpop.f32.mrf.mxu0
        %903 = vmatprep.mubr.f32.mxu0 0.0
        %v904 = vand.u32 %v275, 4294901760
        %v905 = vsub.f32 %v275, %v904
        %906 = vmatmul.mubr.f32.gmra.mxu0 %v905
        %v907 = vpop.f32.mrf.mxu0
        %v908 = vadd.f32 %v711, %v907
        %v909 = vpop.f32.mrf.mxu0
        %910 = vmatprep.mubr.f32.mxu0 0.0
        %v911 = vand.u32 %v276, 4294901760
        %v912 = vsub.f32 %v276, %v911
        %913 = vmatmul.mubr.f32.gmra.mxu0 %v912
        %v914 = vpop.f32.mrf.mxu0
        %v915 = vadd.f32 %v717, %v914
        %v916 = vpop.f32.mrf.mxu0
        %917 = vmatprep.mubr.f32.mxu0 0.0
        %v918 = vand.u32 %v277, 4294901760
        %v919 = vsub.f32 %v277, %v918
        %920 = vmatmul.mubr.f32.gmra.mxu0 %v919
        %v921 = vpop.f32.mrf.mxu0
        %v922 = vadd.f32 %v723, %v921
        %v923 = vpop.f32.mrf.mxu0
        %924 = vmatprep.mubr.f32.mxu0 0.0
        %v925 = vand.u32 %v278, 4294901760
        %v926 = vsub.f32 %v278, %v925
        %927 = vmatmul.mubr.f32.gmra.mxu0 %v926
        %v928 = vpop.f32.mrf.mxu0
        %v929 = vadd.f32 %v729, %v928
        %v930 = vpop.f32.mrf.mxu0
        %931 = vmatprep.mubr.f32.mxu0 0.0
        %v932 = vand.u32 %v279, 4294901760
        %v933 = vsub.f32 %v279, %v932
        %934 = vmatmul.mubr.f32.gmra.mxu0 %v933
        %v935 = vpop.f32.mrf.mxu0
        %v936 = vadd.f32 %v735, %v935
        %v937 = vpop.f32.mrf.mxu0
        %938 = vmatprep.mubr.f32.mxu0 0.0
        %v939 = vand.u32 %v280, 4294901760
        %v940 = vsub.f32 %v280, %v939
        %941 = vmatmul.mubr.f32.gmra.mxu0 %v940
        %v942 = vpop.f32.mrf.mxu0
        %v943 = vadd.f32 %v741, %v942
        %v944 = vpop.f32.mrf.mxu0
        %945 = vmatprep.mubr.f32.mxu0 0.0
        %v946 = vand.u32 %v281, 4294901760
        %v947 = vsub.f32 %v281, %v946
        %948 = vmatmul.mubr.f32.gmra.mxu0 %v947
        %v949 = vpop.f32.mrf.mxu0
        %v950 = vadd.f32 %v747, %v949
        %v951 = vpop.f32.mrf.mxu0
        %952 = vmatprep.mubr.f32.mxu0 0.0
        %v953 = vand.u32 %v282, 4294901760
        %v954 = vsub.f32 %v282, %v953
        %955 = vmatmul.mubr.f32.gmra.mxu0 %v954
        %v956 = vpop.f32.mrf.mxu0
        %v957 = vadd.f32 %v753, %v956
        %v958 = vpop.f32.mrf.mxu0
        %959 = vmatprep.mubr.f32.mxu0 0.0
        %v960 = vand.u32 %v283, 4294901760
        %v961 = vsub.f32 %v283, %v960
        %962 = vmatmul.mubr.f32.gmra.mxu0 %v961
        %v963 = vpop.f32.mrf.mxu0
        %v964 = vadd.f32 %v759, %v963
        %v965 = vpop.f32.mrf.mxu0
        %966 = vmatprep.mubr.f32.mxu0 0.0
        %v967 = vand.u32 %v284, 4294901760
        %v968 = vsub.f32 %v284, %v967
        %969 = vmatmul.mubr.f32.gmra.mxu0 %v968
        %v970 = vpop.f32.mrf.mxu0
        %v971 = vadd.f32 %v765, %v970
        %v972 = vpop.f32.mrf.mxu0
        %973 = vmatprep.mubr.f32.mxu0 0.0
        %v974 = vand.u32 %v285, 4294901760
        %v975 = vsub.f32 %v285, %v974
        %976 = vmatmul.mubr.f32.gmra.mxu0 %v975
        %v977 = vpop.f32.mrf.mxu0
        %v978 = vadd.f32 %v771, %v977
        %v979 = vpop.f32.mrf.mxu0
        %980 = vmatprep.mubr.f32.mxu0 0.0
        %v981 = vand.u32 %v286, 4294901760
        %v982 = vsub.f32 %v286, %v981
        %983 = vmatmul.mubr.f32.gmra.mxu0 %v982
        %v984 = vpop.f32.mrf.mxu0
        %v985 = vadd.f32 %v777, %v984
        %v986 = vpop.f32.mrf.mxu0
        %987 = vmatprep.mubr.f32.mxu0 0.0
        %v988 = vand.u32 %v287, 4294901760
        %v989 = vsub.f32 %v287, %v988
        %990 = vmatmul.mubr.f32.gmra.mxu0 %v989
        %v991 = vpop.f32.mrf.mxu0
        %v992 = vadd.f32 %v783, %v991
        %v993 = vpop.f32.mrf.mxu0
        %994 = vdwg.mxu0
        %995 = vmatprep.subr.mxu0 0.0
        %v996 = vand.u32 %v303, 4294901760
        %997 = vmatpush1.msra.mxu0 %v996
        %998 = vmatprep.subr.mxu0 0.0
        %v999 = vand.u32 %v302, 4294901760
        %1000 = vmatpush1.msra.mxu0 %v999
        %1001 = vmatprep.subr.mxu0 0.0
        %v1002 = vand.u32 %v301, 4294901760
        %1003 = vmatpush1.msra.mxu0 %v1002
        %1004 = vmatprep.subr.mxu0 0.0
        %v1005 = vand.u32 %v300, 4294901760
        %1006 = vmatpush1.msra.mxu0 %v1005
        %1007 = vmatprep.subr.mxu0 0.0
        %v1008 = vand.u32 %v299, 4294901760
        %1009 = vmatpush1.msra.mxu0 %v1008
        %1010 = vmatprep.subr.mxu0 0.0
        %v1011 = vand.u32 %v298, 4294901760
        %1012 = vmatpush1.msra.mxu0 %v1011
        %1013 = vmatprep.subr.mxu0 0.0
        %v1014 = vand.u32 %v297, 4294901760
        %1015 = vmatpush1.msra.mxu0 %v1014
        %1016 = vmatprep.subr.mxu0 0.0
        %v1017 = vand.u32 %v296, 4294901760
        %1018 = vmatpush1.msra.mxu0 %v1017
        %1019 = vmatprep.subr.mxu0 0.0
        %v1020 = vand.u32 %v295, 4294901760
        %1021 = vmatpush1.msra.mxu0 %v1020
        %1022 = vmatprep.subr.mxu0 0.0
        %v1023 = vand.u32 %v294, 4294901760
        %1024 = vmatpush1.msra.mxu0 %v1023
        %1025 = vmatprep.subr.mxu0 0.0
        %v1026 = vand.u32 %v293, 4294901760
        %1027 = vmatpush1.msra.mxu0 %v1026
        %1028 = vmatprep.subr.mxu0 0.0
        %v1029 = vand.u32 %v292, 4294901760
        %1030 = vmatpush1.msra.mxu0 %v1029
        %1031 = vmatprep.subr.mxu0 0.0
        %v1032 = vand.u32 %v291, 4294901760
        %1033 = vmatpush1.msra.mxu0 %v1032
        %1034 = vmatprep.subr.mxu0 0.0
        %v1035 = vand.u32 %v290, 4294901760
        %1036 = vmatpush1.msra.mxu0 %v1035
        %1037 = vmatprep.subr.mxu0 0.0
        %v1038 = vand.u32 %v289, 4294901760
        %1039 = vmatpush1.msra.mxu0 %v1038
        %1040 = vmatprep.subr.mxu0 0.0
        %v1041 = vand.u32 %v288, 4294901760
        %1042 = vmatpush1.msra.mxu0 %v1041
        %1043 = vmatprep.subr.mxu0 0.0
        %1044 = vmatpush2.msra.mxu0 0.0
        %1045 = vmatprep.subr.mxu0 0.0
        %1046 = vmatpush2.msra.mxu0 0.0
        %1047 = vmatprep.subr.mxu0 0.0
        %1048 = vmatpush2.msra.mxu0 0.0
        %1049 = vmatprep.subr.mxu0 0.0
        %1050 = vmatpush2.msra.mxu0 0.0
        %1051 = vmatprep.subr.mxu0 0.0
        %1052 = vmatpush2.msra.mxu0 0.0
        %1053 = vmatprep.subr.mxu0 0.0
        %1054 = vmatpush2.msra.mxu0 0.0
        %1055 = vmatprep.subr.mxu0 0.0
        %1056 = vmatpush2.msra.mxu0 0.0
        %1057 = vmatprep.subr.mxu0 0.0
        %1058 = vmatpush2.msra.mxu0 0.0
        %1059 = vmatprep.subr.mxu0 0.0
        %1060 = vmatpush2.msra.mxu0 0.0
        %1061 = vmatprep.subr.mxu0 0.0
        %1062 = vmatpush2.msra.mxu0 0.0
        %1063 = vmatprep.subr.mxu0 0.0
        %1064 = vmatpush2.msra.mxu0 0.0
        %1065 = vmatprep.subr.mxu0 0.0
        %1066 = vmatpush2.msra.mxu0 0.0
        %1067 = vmatprep.subr.mxu0 0.0
        %1068 = vmatpush2.msra.mxu0 0.0
        %1069 = vmatprep.subr.mxu0 0.0
        %1070 = vmatpush2.msra.mxu0 0.0
        %1071 = vmatprep.subr.mxu0 0.0
        %1072 = vmatpush2.msra.mxu0 0.0
        %1073 = vmatprep.subr.mxu0 0.0
        %1074 = vmatpush2.msra.mxu0 0.0
        %1075 = vmatprep.mubr.f32.mxu0 0.0
        %v1076 = vand.u32 %v272, 4294901760
        %v1077 = vsub.f32 %v272, %v1076
        %v1078 = vand.u32 %v1077, 4294901760
        %1079 = vmatmul.mubr.f32.gmra.mxu0 %v1078
        %v1080 = vpop.f32.mrf.mxu0
        %v1081 = vadd.f32 %v887, %v1080
        %v1082 = vpop.f32.mrf.mxu0
        %1083 = vmatprep.mubr.f32.mxu0 0.0
        %v1084 = vand.u32 %v273, 4294901760
        %v1085 = vsub.f32 %v273, %v1084
        %v1086 = vand.u32 %v1085, 4294901760
        %1087 = vmatmul.mubr.f32.gmra.mxu0 %v1086
        %v1088 = vpop.f32.mrf.mxu0
        %v1089 = vadd.f32 %v894, %v1088
        %v1090 = vpop.f32.mrf.mxu0
        %1091 = vmatprep.mubr.f32.mxu0 0.0
        %v1092 = vand.u32 %v274, 4294901760
        %v1093 = vsub.f32 %v274, %v1092
        %v1094 = vand.u32 %v1093, 4294901760
        %1095 = vmatmul.mubr.f32.gmra.mxu0 %v1094
        %v1096 = vpop.f32.mrf.mxu0
        %v1097 = vadd.f32 %v901, %v1096
        %v1098 = vpop.f32.mrf.mxu0
        %1099 = vmatprep.mubr.f32.mxu0 0.0
        %v1100 = vand.u32 %v275, 4294901760
        %v1101 = vsub.f32 %v275, %v1100
        %v1102 = vand.u32 %v1101, 4294901760
        %1103 = vmatmul.mubr.f32.gmra.mxu0 %v1102
        %v1104 = vpop.f32.mrf.mxu0
        %v1105 = vadd.f32 %v908, %v1104
        %v1106 = vpop.f32.mrf.mxu0
        %1107 = vmatprep.mubr.f32.mxu0 0.0
        %v1108 = vand.u32 %v276, 4294901760
        %v1109 = vsub.f32 %v276, %v1108
        %v1110 = vand.u32 %v1109, 4294901760
        %1111 = vmatmul.mubr.f32.gmra.mxu0 %v1110
        %v1112 = vpop.f32.mrf.mxu0
        %v1113 = vadd.f32 %v915, %v1112
        %v1114 = vpop.f32.mrf.mxu0
        %1115 = vmatprep.mubr.f32.mxu0 0.0
        %v1116 = vand.u32 %v277, 4294901760
        %v1117 = vsub.f32 %v277, %v1116
        %v1118 = vand.u32 %v1117, 4294901760
        %1119 = vmatmul.mubr.f32.gmra.mxu0 %v1118
        %v1120 = vpop.f32.mrf.mxu0
        %v1121 = vadd.f32 %v922, %v1120
        %v1122 = vpop.f32.mrf.mxu0
        %1123 = vmatprep.mubr.f32.mxu0 0.0
        %v1124 = vand.u32 %v278, 4294901760
        %v1125 = vsub.f32 %v278, %v1124
        %v1126 = vand.u32 %v1125, 4294901760
        %1127 = vmatmul.mubr.f32.gmra.mxu0 %v1126
        %v1128 = vpop.f32.mrf.mxu0
        %v1129 = vadd.f32 %v929, %v1128
        %v1130 = vpop.f32.mrf.mxu0
        %1131 = vmatprep.mubr.f32.mxu0 0.0
        %v1132 = vand.u32 %v279, 4294901760
        %v1133 = vsub.f32 %v279, %v1132
        %v1134 = vand.u32 %v1133, 4294901760
        %1135 = vmatmul.mubr.f32.gmra.mxu0 %v1134
        %v1136 = vpop.f32.mrf.mxu0
        %v1137 = vadd.f32 %v936, %v1136
        %v1138 = vpop.f32.mrf.mxu0
        %1139 = vmatprep.mubr.f32.mxu0 0.0
        %v1140 = vand.u32 %v280, 4294901760
        %v1141 = vsub.f32 %v280, %v1140
        %v1142 = vand.u32 %v1141, 4294901760
        %1143 = vmatmul.mubr.f32.gmra.mxu0 %v1142
        %v1144 = vpop.f32.mrf.mxu0
        %v1145 = vadd.f32 %v943, %v1144
        %v1146 = vpop.f32.mrf.mxu0
        %1147 = vmatprep.mubr.f32.mxu0 0.0
        %v1148 = vand.u32 %v281, 4294901760
        %v1149 = vsub.f32 %v281, %v1148
        %v1150 = vand.u32 %v1149, 4294901760
        %1151 = vmatmul.mubr.f32.gmra.mxu0 %v1150
        %v1152 = vpop.f32.mrf.mxu0
        %v1153 = vadd.f32 %v950, %v1152
        %v1154 = vpop.f32.mrf.mxu0
        %1155 = vmatprep.mubr.f32.mxu0 0.0
        %v1156 = vand.u32 %v282, 4294901760
        %v1157 = vsub.f32 %v282, %v1156
        %v1158 = vand.u32 %v1157, 4294901760
        %1159 = vmatmul.mubr.f32.gmra.mxu0 %v1158
        %v1160 = vpop.f32.mrf.mxu0
        %v1161 = vadd.f32 %v957, %v1160
        %v1162 = vpop.f32.mrf.mxu0
        %1163 = vmatprep.mubr.f32.mxu0 0.0
        %v1164 = vand.u32 %v283, 4294901760
        %v1165 = vsub.f32 %v283, %v1164
        %v1166 = vand.u32 %v1165, 4294901760
        %1167 = vmatmul.mubr.f32.gmra.mxu0 %v1166
        %v1168 = vpop.f32.mrf.mxu0
        %v1169 = vadd.f32 %v964, %v1168
        %v1170 = vpop.f32.mrf.mxu0
        %1171 = vmatprep.mubr.f32.mxu0 0.0
        %v1172 = vand.u32 %v284, 4294901760
        %v1173 = vsub.f32 %v284, %v1172
        %v1174 = vand.u32 %v1173, 4294901760
        %1175 = vmatmul.mubr.f32.gmra.mxu0 %v1174
        %v1176 = vpop.f32.mrf.mxu0
        %v1177 = vadd.f32 %v971, %v1176
        %v1178 = vpop.f32.mrf.mxu0
        %1179 = vmatprep.mubr.f32.mxu0 0.0
        %v1180 = vand.u32 %v285, 4294901760
        %v1181 = vsub.f32 %v285, %v1180
        %v1182 = vand.u32 %v1181, 4294901760
        %1183 = vmatmul.mubr.f32.gmra.mxu0 %v1182
        %v1184 = vpop.f32.mrf.mxu0
        %v1185 = vadd.f32 %v978, %v1184
        %v1186 = vpop.f32.mrf.mxu0
        %1187 = vmatprep.mubr.f32.mxu0 0.0
        %v1188 = vand.u32 %v286, 4294901760
        %v1189 = vsub.f32 %v286, %v1188
        %v1190 = vand.u32 %v1189, 4294901760
        %1191 = vmatmul.mubr.f32.gmra.mxu0 %v1190
        %v1192 = vpop.f32.mrf.mxu0
        %v1193 = vadd.f32 %v985, %v1192
        %v1194 = vpop.f32.mrf.mxu0
        %1195 = vmatprep.mubr.f32.mxu0 0.0
        %v1196 = vand.u32 %v287, 4294901760
        %v1197 = vsub.f32 %v287, %v1196
        %v1198 = vand.u32 %v1197, 4294901760
        %1199 = vmatmul.mubr.f32.gmra.mxu0 %v1198
        %v1200 = vpop.f32.mrf.mxu0
        %v1201 = vadd.f32 %v992, %v1200
        %v1202 = vpop.f32.mrf.mxu0
        %1203 = vdwg.mxu0
        %1204 = vmatprep.subr.mxu0 0.0
        %v1205 = vand.u32 %v303, 4294901760
        %v1206 = vsub.f32 %v303, %v1205
        %v1207 = vand.u32 %v1206, 4294901760
        %1208 = vmatpush1.msra.mxu0 %v1207
        %1209 = vmatprep.subr.mxu0 0.0
        %v1210 = vand.u32 %v302, 4294901760
        %v1211 = vsub.f32 %v302, %v1210
        %v1212 = vand.u32 %v1211, 4294901760
        %1213 = vmatpush1.msra.mxu0 %v1212
        %1214 = vmatprep.subr.mxu0 0.0
        %v1215 = vand.u32 %v301, 4294901760
        %v1216 = vsub.f32 %v301, %v1215
        %v1217 = vand.u32 %v1216, 4294901760
        %1218 = vmatpush1.msra.mxu0 %v1217
        %1219 = vmatprep.subr.mxu0 0.0
        %v1220 = vand.u32 %v300, 4294901760
        %v1221 = vsub.f32 %v300, %v1220
        %v1222 = vand.u32 %v1221, 4294901760
        %1223 = vmatpush1.msra.mxu0 %v1222
        %1224 = vmatprep.subr.mxu0 0.0
        %v1225 = vand.u32 %v299, 4294901760
        %v1226 = vsub.f32 %v299, %v1225
        %v1227 = vand.u32 %v1226, 4294901760
        %1228 = vmatpush1.msra.mxu0 %v1227
        %1229 = vmatprep.subr.mxu0 0.0
        %v1230 = vand.u32 %v298, 4294901760
        %v1231 = vsub.f32 %v298, %v1230
        %v1232 = vand.u32 %v1231, 4294901760
        %1233 = vmatpush1.msra.mxu0 %v1232
        %1234 = vmatprep.subr.mxu0 0.0
        %v1235 = vand.u32 %v297, 4294901760
        %v1236 = vsub.f32 %v297, %v1235
        %v1237 = vand.u32 %v1236, 4294901760
        %1238 = vmatpush1.msra.mxu0 %v1237
        %1239 = vmatprep.subr.mxu0 0.0
        %v1240 = vand.u32 %v296, 4294901760
        %v1241 = vsub.f32 %v296, %v1240
        %v1242 = vand.u32 %v1241, 4294901760
        %1243 = vmatpush1.msra.mxu0 %v1242
        %1244 = vmatprep.subr.mxu0 0.0
        %v1245 = vand.u32 %v295, 4294901760
        %v1246 = vsub.f32 %v295, %v1245
        %v1247 = vand.u32 %v1246, 4294901760
        %1248 = vmatpush1.msra.mxu0 %v1247
        %1249 = vmatprep.subr.mxu0 0.0
        %v1250 = vand.u32 %v294, 4294901760
        %v1251 = vsub.f32 %v294, %v1250
        %v1252 = vand.u32 %v1251, 4294901760
        %1253 = vmatpush1.msra.mxu0 %v1252
        %1254 = vmatprep.subr.mxu0 0.0
        %v1255 = vand.u32 %v293, 4294901760
        %v1256 = vsub.f32 %v293, %v1255
        %v1257 = vand.u32 %v1256, 4294901760
        %1258 = vmatpush1.msra.mxu0 %v1257
        %1259 = vmatprep.subr.mxu0 0.0
        %v1260 = vand.u32 %v292, 4294901760
        %v1261 = vsub.f32 %v292, %v1260
        %v1262 = vand.u32 %v1261, 4294901760
        %1263 = vmatpush1.msra.mxu0 %v1262
        %1264 = vmatprep.subr.mxu0 0.0
        %v1265 = vand.u32 %v291, 4294901760
        %v1266 = vsub.f32 %v291, %v1265
        %v1267 = vand.u32 %v1266, 4294901760
        %1268 = vmatpush1.msra.mxu0 %v1267
        %1269 = vmatprep.subr.mxu0 0.0
        %v1270 = vand.u32 %v290, 4294901760
        %v1271 = vsub.f32 %v290, %v1270
        %v1272 = vand.u32 %v1271, 4294901760
        %1273 = vmatpush1.msra.mxu0 %v1272
        %1274 = vmatprep.subr.mxu0 0.0
        %v1275 = vand.u32 %v289, 4294901760
        %v1276 = vsub.f32 %v289, %v1275
        %v1277 = vand.u32 %v1276, 4294901760
        %1278 = vmatpush1.msra.mxu0 %v1277
        %1279 = vmatprep.subr.mxu0 0.0
        %v1280 = vand.u32 %v288, 4294901760
        %v1281 = vsub.f32 %v288, %v1280
        %v1282 = vand.u32 %v1281, 4294901760
        %1283 = vmatpush1.msra.mxu0 %v1282
        %1284 = vmatprep.subr.mxu0 0.0
        %1285 = vmatpush2.msra.mxu0 0.0
        %1286 = vmatprep.subr.mxu0 0.0
        %1287 = vmatpush2.msra.mxu0 0.0
        %1288 = vmatprep.subr.mxu0 0.0
        %1289 = vmatpush2.msra.mxu0 0.0
        %1290 = vmatprep.subr.mxu0 0.0
        %1291 = vmatpush2.msra.mxu0 0.0
        %1292 = vmatprep.subr.mxu0 0.0
        %1293 = vmatpush2.msra.mxu0 0.0
        %1294 = vmatprep.subr.mxu0 0.0
        %1295 = vmatpush2.msra.mxu0 0.0
        %1296 = vmatprep.subr.mxu0 0.0
        %1297 = vmatpush2.msra.mxu0 0.0
        %1298 = vmatprep.subr.mxu0 0.0
        %1299 = vmatpush2.msra.mxu0 0.0
        %1300 = vmatprep.subr.mxu0 0.0
        %1301 = vmatpush2.msra.mxu0 0.0
        %1302 = vmatprep.subr.mxu0 0.0
        %1303 = vmatpush2.msra.mxu0 0.0
        %1304 = vmatprep.subr.mxu0 0.0
        %1305 = vmatpush2.msra.mxu0 0.0
        %1306 = vmatprep.subr.mxu0 0.0
        %1307 = vmatpush2.msra.mxu0 0.0
        %1308 = vmatprep.subr.mxu0 0.0
        %1309 = vmatpush2.msra.mxu0 0.0
        %1310 = vmatprep.subr.mxu0 0.0
        %1311 = vmatpush2.msra.mxu0 0.0
        %1312 = vmatprep.subr.mxu0 0.0
        %1313 = vmatpush2.msra.mxu0 0.0
        %1314 = vmatprep.subr.mxu0 0.0
        %1315 = vmatpush2.msra.mxu0 0.0
        %1316 = vmatprep.mubr.f32.mxu0 0.0
        %v1317 = vand.u32 %v272, 4294901760
        %1318 = vmatmul.mubr.f32.gmra.mxu0 %v1317
        %v1319 = vpop.f32.mrf.mxu0
        %v1320 = vadd.f32 %v1081, %v1319
        %v1321 = vpop.f32.mrf.mxu0
        %1322 = vmatprep.mubr.f32.mxu0 0.0
        %v1323 = vand.u32 %v273, 4294901760
        %1324 = vmatmul.mubr.f32.gmra.mxu0 %v1323
        %v1325 = vpop.f32.mrf.mxu0
        %v1326 = vadd.f32 %v1089, %v1325
        %v1327 = vpop.f32.mrf.mxu0
        %1328 = vmatprep.mubr.f32.mxu0 0.0
        %v1329 = vand.u32 %v274, 4294901760
        %1330 = vmatmul.mubr.f32.gmra.mxu0 %v1329
        %v1331 = vpop.f32.mrf.mxu0
        %v1332 = vadd.f32 %v1097, %v1331
        %v1333 = vpop.f32.mrf.mxu0
        %1334 = vmatprep.mubr.f32.mxu0 0.0
        %v1335 = vand.u32 %v275, 4294901760
        %1336 = vmatmul.mubr.f32.gmra.mxu0 %v1335
        %v1337 = vpop.f32.mrf.mxu0
        %v1338 = vadd.f32 %v1105, %v1337
        %v1339 = vpop.f32.mrf.mxu0
        %1340 = vmatprep.mubr.f32.mxu0 0.0
        %v1341 = vand.u32 %v276, 4294901760
        %1342 = vmatmul.mubr.f32.gmra.mxu0 %v1341
        %v1343 = vpop.f32.mrf.mxu0
        %v1344 = vadd.f32 %v1113, %v1343
        %v1345 = vpop.f32.mrf.mxu0
        %1346 = vmatprep.mubr.f32.mxu0 0.0
        %v1347 = vand.u32 %v277, 4294901760
        %1348 = vmatmul.mubr.f32.gmra.mxu0 %v1347
        %v1349 = vpop.f32.mrf.mxu0
        %v1350 = vadd.f32 %v1121, %v1349
        %v1351 = vpop.f32.mrf.mxu0
        %1352 = vmatprep.mubr.f32.mxu0 0.0
        %v1353 = vand.u32 %v278, 4294901760
        %1354 = vmatmul.mubr.f32.gmra.mxu0 %v1353
        %v1355 = vpop.f32.mrf.mxu0
        %v1356 = vadd.f32 %v1129, %v1355
        %v1357 = vpop.f32.mrf.mxu0
        %1358 = vmatprep.mubr.f32.mxu0 0.0
        %v1359 = vand.u32 %v279, 4294901760
        %1360 = vmatmul.mubr.f32.gmra.mxu0 %v1359
        %v1361 = vpop.f32.mrf.mxu0
        %v1362 = vadd.f32 %v1137, %v1361
        %v1363 = vpop.f32.mrf.mxu0
        %1364 = vmatprep.mubr.f32.mxu0 0.0
        %v1365 = vand.u32 %v280, 4294901760
        %1366 = vmatmul.mubr.f32.gmra.mxu0 %v1365
        %v1367 = vpop.f32.mrf.mxu0
        %v1368 = vadd.f32 %v1145, %v1367
        %v1369 = vpop.f32.mrf.mxu0
        %1370 = vmatprep.mubr.f32.mxu0 0.0
        %v1371 = vand.u32 %v281, 4294901760
        %1372 = vmatmul.mubr.f32.gmra.mxu0 %v1371
        %v1373 = vpop.f32.mrf.mxu0
        %v1374 = vadd.f32 %v1153, %v1373
        %v1375 = vpop.f32.mrf.mxu0
        %1376 = vmatprep.mubr.f32.mxu0 0.0
        %v1377 = vand.u32 %v282, 4294901760
        %1378 = vmatmul.mubr.f32.gmra.mxu0 %v1377
        %v1379 = vpop.f32.mrf.mxu0
        %v1380 = vadd.f32 %v1161, %v1379
        %v1381 = vpop.f32.mrf.mxu0
        %1382 = vmatprep.mubr.f32.mxu0 0.0
        %v1383 = vand.u32 %v283, 4294901760
        %1384 = vmatmul.mubr.f32.gmra.mxu0 %v1383
        %v1385 = vpop.f32.mrf.mxu0
        %v1386 = vadd.f32 %v1169, %v1385
        %v1387 = vpop.f32.mrf.mxu0
        %1388 = vmatprep.mubr.f32.mxu0 0.0
        %v1389 = vand.u32 %v284, 4294901760
        %1390 = vmatmul.mubr.f32.gmra.mxu0 %v1389
        %v1391 = vpop.f32.mrf.mxu0
        %v1392 = vadd.f32 %v1177, %v1391
        %v1393 = vpop.f32.mrf.mxu0
        %1394 = vmatprep.mubr.f32.mxu0 0.0
        %v1395 = vand.u32 %v285, 4294901760
        %1396 = vmatmul.mubr.f32.gmra.mxu0 %v1395
        %v1397 = vpop.f32.mrf.mxu0
        %v1398 = vadd.f32 %v1185, %v1397
        %v1399 = vpop.f32.mrf.mxu0
        %1400 = vmatprep.mubr.f32.mxu0 0.0
        %v1401 = vand.u32 %v286, 4294901760
        %1402 = vmatmul.mubr.f32.gmra.mxu0 %v1401
        %v1403 = vpop.f32.mrf.mxu0
        %v1404 = vadd.f32 %v1193, %v1403
        %v1405 = vpop.f32.mrf.mxu0
        %1406 = vmatprep.mubr.f32.mxu0 0.0
        %v1407 = vand.u32 %v287, 4294901760
        %1408 = vmatmul.mubr.f32.gmra.mxu0 %v1407
        %v1409 = vpop.f32.mrf.mxu0
        %v1410 = vadd.f32 %v1201, %v1409
        %v1411 = vpop.f32.mrf.mxu0
        %1412 = vdwg.mxu0
        %1413 = vmatprep.subr.mxu0 0.0
        %v1414 = vand.u32 %v303, 4294901760
        %1415 = vmatpush1.msra.mxu0 %v1414
        %1416 = vmatprep.subr.mxu0 0.0
        %v1417 = vand.u32 %v302, 4294901760
        %1418 = vmatpush1.msra.mxu0 %v1417
        %1419 = vmatprep.subr.mxu0 0.0
        %v1420 = vand.u32 %v301, 4294901760
        %1421 = vmatpush1.msra.mxu0 %v1420
        %1422 = vmatprep.subr.mxu0 0.0
        %v1423 = vand.u32 %v300, 4294901760
        %1424 = vmatpush1.msra.mxu0 %v1423
        %1425 = vmatprep.subr.mxu0 0.0
        %v1426 = vand.u32 %v299, 4294901760
        %1427 = vmatpush1.msra.mxu0 %v1426
        %1428 = vmatprep.subr.mxu0 0.0
        %v1429 = vand.u32 %v298, 4294901760
        %1430 = vmatpush1.msra.mxu0 %v1429
        %1431 = vmatprep.subr.mxu0 0.0
        %v1432 = vand.u32 %v297, 4294901760
        %1433 = vmatpush1.msra.mxu0 %v1432
        %1434 = vmatprep.subr.mxu0 0.0
        %v1435 = vand.u32 %v296, 4294901760
        %1436 = vmatpush1.msra.mxu0 %v1435
        %1437 = vmatprep.subr.mxu0 0.0
        %v1438 = vand.u32 %v295, 4294901760
        %1439 = vmatpush1.msra.mxu0 %v1438
        %1440 = vmatprep.subr.mxu0 0.0
        %v1441 = vand.u32 %v294, 4294901760
        %1442 = vmatpush1.msra.mxu0 %v1441
        %1443 = vmatprep.subr.mxu0 0.0
        %v1444 = vand.u32 %v293, 4294901760
        %1445 = vmatpush1.msra.mxu0 %v1444
        %1446 = vmatprep.subr.mxu0 0.0
        %v1447 = vand.u32 %v292, 4294901760
        %1448 = vmatpush1.msra.mxu0 %v1447
        %1449 = vmatprep.subr.mxu0 0.0
        %v1450 = vand.u32 %v291, 4294901760
        %1451 = vmatpush1.msra.mxu0 %v1450
        %1452 = vmatprep.subr.mxu0 0.0
        %v1453 = vand.u32 %v290, 4294901760
        %1454 = vmatpush1.msra.mxu0 %v1453
        %1455 = vmatprep.subr.mxu0 0.0
        %v1456 = vand.u32 %v289, 4294901760
        %1457 = vmatpush1.msra.mxu0 %v1456
        %1458 = vmatprep.subr.mxu0 0.0
        %v1459 = vand.u32 %v288, 4294901760
        %1460 = vmatpush1.msra.mxu0 %v1459
        %1461 = vmatprep.subr.mxu0 0.0
        %1462 = vmatpush2.msra.mxu0 0.0
        %1463 = vmatprep.subr.mxu0 0.0
        %1464 = vmatpush2.msra.mxu0 0.0
        %1465 = vmatprep.subr.mxu0 0.0
        %1466 = vmatpush2.msra.mxu0 0.0
        %1467 = vmatprep.subr.mxu0 0.0
        %1468 = vmatpush2.msra.mxu0 0.0
        %1469 = vmatprep.subr.mxu0 0.0
        %1470 = vmatpush2.msra.mxu0 0.0
        %1471 = vmatprep.subr.mxu0 0.0
        %1472 = vmatpush2.msra.mxu0 0.0
        %1473 = vmatprep.subr.mxu0 0.0
        %1474 = vmatpush2.msra.mxu0 0.0
        %1475 = vmatprep.subr.mxu0 0.0
        %1476 = vmatpush2.msra.mxu0 0.0
        %1477 = vmatprep.subr.mxu0 0.0
        %1478 = vmatpush2.msra.mxu0 0.0
        %1479 = vmatprep.subr.mxu0 0.0
        %1480 = vmatpush2.msra.mxu0 0.0
        %1481 = vmatprep.subr.mxu0 0.0
        %1482 = vmatpush2.msra.mxu0 0.0
        %1483 = vmatprep.subr.mxu0 0.0
        %1484 = vmatpush2.msra.mxu0 0.0
        %1485 = vmatprep.subr.mxu0 0.0
        %1486 = vmatpush2.msra.mxu0 0.0
        %1487 = vmatprep.subr.mxu0 0.0
        %1488 = vmatpush2.msra.mxu0 0.0
        %1489 = vmatprep.subr.mxu0 0.0
        %1490 = vmatpush2.msra.mxu0 0.0
        %1491 = vmatprep.subr.mxu0 0.0
        %1492 = vmatpush2.msra.mxu0 0.0
        %1493 = vmatprep.mubr.f32.mxu0 0.0
        %v1494 = vand.u32 %v272, 4294901760
        %1495 = vmatmul.mubr.f32.gmra.mxu0 %v1494
        %v1496 = vpop.f32.mrf.mxu0
        %v1497 = vadd.f32 %v1320, %v1496
        %v1498 = vpop.f32.mrf.mxu0
        %1499 = vmatprep.mubr.f32.mxu0 0.0
        %v1500 = vand.u32 %v273, 4294901760
        %1501 = vmatmul.mubr.f32.gmra.mxu0 %v1500
        %v1502 = vpop.f32.mrf.mxu0
        %v1503 = vadd.f32 %v1326, %v1502
        %v1504 = vpop.f32.mrf.mxu0
        %1505 = vmatprep.mubr.f32.mxu0 0.0
        %v1506 = vand.u32 %v274, 4294901760
        %1507 = vmatmul.mubr.f32.gmra.mxu0 %v1506
        %v1508 = vpop.f32.mrf.mxu0
        %v1509 = vadd.f32 %v1332, %v1508
        %v1510 = vpop.f32.mrf.mxu0
        %1511 = vmatprep.mubr.f32.mxu0 0.0
        %v1512 = vand.u32 %v275, 4294901760
        %1513 = vmatmul.mubr.f32.gmra.mxu0 %v1512
        %v1514 = vpop.f32.mrf.mxu0
        %v1515 = vadd.f32 %v1338, %v1514
        %v1516 = vpop.f32.mrf.mxu0
        %1517 = vmatprep.mubr.f32.mxu0 0.0
        %v1518 = vand.u32 %v276, 4294901760
        %1519 = vmatmul.mubr.f32.gmra.mxu0 %v1518
        %v1520 = vpop.f32.mrf.mxu0
        %v1521 = vadd.f32 %v1344, %v1520
        %v1522 = vpop.f32.mrf.mxu0
        %1523 = vmatprep.mubr.f32.mxu0 0.0
        %v1524 = vand.u32 %v277, 4294901760
        %1525 = vmatmul.mubr.f32.gmra.mxu0 %v1524
        %v1526 = vpop.f32.mrf.mxu0
        %v1527 = vadd.f32 %v1350, %v1526
        %v1528 = vpop.f32.mrf.mxu0
        %1529 = vmatprep.mubr.f32.mxu0 0.0
        %v1530 = vand.u32 %v278, 4294901760
        %1531 = vmatmul.mubr.f32.gmra.mxu0 %v1530
        %v1532 = vpop.f32.mrf.mxu0
        %v1533 = vadd.f32 %v1356, %v1532
        %v1534 = vpop.f32.mrf.mxu0
        %1535 = vmatprep.mubr.f32.mxu0 0.0
        %v1536 = vand.u32 %v279, 4294901760
        %1537 = vmatmul.mubr.f32.gmra.mxu0 %v1536
        %v1538 = vpop.f32.mrf.mxu0
        %v1539 = vadd.f32 %v1362, %v1538
        %v1540 = vpop.f32.mrf.mxu0
        %1541 = vmatprep.mubr.f32.mxu0 0.0
        %v1542 = vand.u32 %v280, 4294901760
        %1543 = vmatmul.mubr.f32.gmra.mxu0 %v1542
        %v1544 = vpop.f32.mrf.mxu0
        %v1545 = vadd.f32 %v1368, %v1544
        %v1546 = vpop.f32.mrf.mxu0
        %1547 = vmatprep.mubr.f32.mxu0 0.0
        %v1548 = vand.u32 %v281, 4294901760
        %1549 = vmatmul.mubr.f32.gmra.mxu0 %v1548
        %v1550 = vpop.f32.mrf.mxu0
        %v1551 = vadd.f32 %v1374, %v1550
        %v1552 = vpop.f32.mrf.mxu0
        %1553 = vmatprep.mubr.f32.mxu0 0.0
        %v1554 = vand.u32 %v282, 4294901760
        %1555 = vmatmul.mubr.f32.gmra.mxu0 %v1554
        %v1556 = vpop.f32.mrf.mxu0
        %v1557 = vadd.f32 %v1380, %v1556
        %v1558 = vpop.f32.mrf.mxu0
        %1559 = vmatprep.mubr.f32.mxu0 0.0
        %v1560 = vand.u32 %v283, 4294901760
        %1561 = vmatmul.mubr.f32.gmra.mxu0 %v1560
        %v1562 = vpop.f32.mrf.mxu0
        %v1563 = vadd.f32 %v1386, %v1562
        %v1564 = vpop.f32.mrf.mxu0
        %1565 = vmatprep.mubr.f32.mxu0 0.0
        %v1566 = vand.u32 %v284, 4294901760
        %1567 = vmatmul.mubr.f32.gmra.mxu0 %v1566
        %v1568 = vpop.f32.mrf.mxu0
        %v1569 = vadd.f32 %v1392, %v1568
        %v1570 = vpop.f32.mrf.mxu0
        %1571 = vmatprep.mubr.f32.mxu0 0.0
        %v1572 = vand.u32 %v285, 4294901760
        %1573 = vmatmul.mubr.f32.gmra.mxu0 %v1572
        %v1574 = vpop.f32.mrf.mxu0
        %v1575 = vadd.f32 %v1398, %v1574
        %v1576 = vpop.f32.mrf.mxu0
        %1577 = vmatprep.mubr.f32.mxu0 0.0
        %v1578 = vand.u32 %v286, 4294901760
        %1579 = vmatmul.mubr.f32.gmra.mxu0 %v1578
        %v1580 = vpop.f32.mrf.mxu0
        %v1581 = vadd.f32 %v1404, %v1580
        %v1582 = vpop.f32.mrf.mxu0
        %1583 = vmatprep.mubr.f32.mxu0 0.0
        %v1584 = vand.u32 %v287, 4294901760
        %1585 = vmatmul.mubr.f32.gmra.mxu0 %v1584
        %v1586 = vpop.f32.mrf.mxu0
        %v1587 = vadd.f32 %v1410, %v1586
        %v1588 = vpop.f32.mrf.mxu0
        %1589 = vdwg.mxu0
        %1590 = vxpose.xlu0.b32.start [1/16] %v1497, 128
        %1591 = vxpose.xlu0.b32.cont [2/16] %v1503, 128
        %1592 = vxpose.xlu0.b32.cont [3/16] %v1509, 128
        %1593 = vxpose.xlu0.b32.cont [4/16] %v1515, 128
        %1594 = vxpose.xlu0.b32.cont [5/16] %v1521, 128
        %1595 = vxpose.xlu0.b32.cont [6/16] %v1527, 128
        %1596 = vxpose.xlu0.b32.cont [7/16] %v1533, 128
        %1597 = vxpose.xlu0.b32.cont [8/16] %v1539, 128
        %1598 = vxpose.xlu0.b32.cont [9/16] %v1545, 128
        %1599 = vxpose.xlu0.b32.cont [10/16] %v1551, 128
        %1600 = vxpose.xlu0.b32.cont [11/16] %v1557, 128
        %1601 = vxpose.xlu0.b32.cont [12/16] %v1563, 128
        %1602 = vxpose.xlu0.b32.cont [13/16] %v1569, 128
        %1603 = vxpose.xlu0.b32.cont [14/16] %v1575, 128
        %1604 = vxpose.xlu0.b32.cont [15/16] %v1581, 128
        %1605 = vxpose.xlu0.b32.end [16/16] %v1587, 128
        %v1606 = vpop.trf.xlu0
        %v1607 = vpop.trf.xlu0
        %v1608 = vpop.trf.xlu0
        %v1609 = vpop.trf.xlu0
        %v1610 = vpop.trf.xlu0
        %v1611 = vpop.trf.xlu0
        %v1612 = vpop.trf.xlu0
        %v1613 = vpop.trf.xlu0
        %v1614 = vpop.trf.xlu0
        %v1615 = vpop.trf.xlu0
        %v1616 = vpop.trf.xlu0
        %v1617 = vpop.trf.xlu0
        %v1618 = vpop.trf.xlu0
        %v1619 = vpop.trf.xlu0
        %v1620 = vpop.trf.xlu0
        %v1621 = vpop.trf.xlu0
        %v1622 = vstv %s270
        %v1623 = vadd.f32 %v1606, %v1622
        %v1624 = vtanh.pop %v1623
        %v1625 = vmul.f32 %v1624, %v1624
        %v1626 = vsub.f32 1.0, %v1625
        %v1627 = vstv %s271
        %v1628 = vmul.f32 %v1626, %v1627
        %v1629 = vadd.f32 %v1628, 1.0
        %1630 = vst [vmem:[%s267] sm:$0xf] %v1629
        %1631 = vxpose.xlu0.b32.start [1/16] %v1624, 128
        %1632 = vxpose.xlu0.b32.cont [2/16] 0.0, 128
        %1633 = vxpose.xlu0.b32.cont [3/16] 0.0, 128
        %1634 = vxpose.xlu0.b32.cont [4/16] 0.0, 128
        %1635 = vxpose.xlu0.b32.cont [5/16] 0.0, 128
        %1636 = vxpose.xlu0.b32.cont [6/16] 0.0, 128
        %1637 = vxpose.xlu0.b32.cont [7/16] 0.0, 128
        %1638 = vxpose.xlu0.b32.cont [8/16] 0.0, 128
        %1639 = vxpose.xlu0.b32.cont [9/16] 0.0, 128
        %1640 = vxpose.xlu0.b32.cont [10/16] 0.0, 128
        %1641 = vxpose.xlu0.b32.cont [11/16] 0.0, 128
        %1642 = vxpose.xlu0.b32.cont [12/16] 0.0, 128
        %1643 = vxpose.xlu0.b32.cont [13/16] 0.0, 128
        %1644 = vxpose.xlu0.b32.cont [14/16] 0.0, 128
        %1645 = vxpose.xlu0.b32.cont [15/16] 0.0, 128
        %1646 = vxpose.xlu0.b32.end [16/16] 0.0, 128
        %v1647 = vpop.trf.xlu0
        %v1648 = vpop.trf.xlu0
        %v1649 = vpop.trf.xlu0
        %v1650 = vpop.trf.xlu0
        %v1651 = vpop.trf.xlu0
        %v1652 = vpop.trf.xlu0
        %v1653 = vpop.trf.xlu0
        %v1654 = vpop.trf.xlu0
        %v1655 = vpop.trf.xlu0
        %v1656 = vpop.trf.xlu0
        %v1657 = vpop.trf.xlu0
        %v1658 = vpop.trf.xlu0
        %v1659 = vpop.trf.xlu0
        %v1660 = vpop.trf.xlu0
        %v1661 = vpop.trf.xlu0
        %v1662 = vpop.trf.xlu0
        %v1663 = vld [vmem:[%s2] sm:$0xf]
        %vm1664 = vcmask 31744
        %v1666 = vsel %vm1664, %v1647, 0
        %v1669 = vsel %vm1664, %v1648, 0
        %v1672 = vsel %vm1664, %v1649, 0
        %v1675 = vsel %vm1664, %v1650, 0
        %v1678 = vsel %vm1664, %v1651, 0
        %v1681 = vsel %vm1664, %v1652, 0
        %v1684 = vsel %vm1664, %v1653, 0
        %v1687 = vsel %vm1664, %v1654, 0
        %v1690 = vsel %vm1664, %v1655, 0
        %v1693 = vsel %vm1664, %v1656, 0
        %v1696 = vsel %vm1664, %v1657, 0
        %v1699 = vsel %vm1664, %v1658, 0
        %v1702 = vsel %vm1664, %v1659, 0
        %v1705 = vsel %vm1664, %v1660, 0
        %v1708 = vsel %vm1664, %v1661, 0
        %v1711 = vsel %vm1664, %v1662, 0
        %vm1713 = vcmask 1043456
        %v1715 = vsel %vm1713, %v1663, 0
        %1717 = vmatprep.subr.mxu0 0.0
        %1718 = vmatpush1.msra.mxu0 0.0
        %1719 = vmatprep.subr.mxu0 0.0
        %1720 = vmatpush1.msra.mxu0 0.0
        %1721 = vmatprep.subr.mxu0 0.0
        %1722 = vmatpush1.msra.mxu0 0.0
        %1723 = vmatprep.subr.mxu0 0.0
        %1724 = vmatpush1.msra.mxu0 0.0
        %1725 = vmatprep.subr.mxu0 0.0
        %1726 = vmatpush1.msra.mxu0 0.0
        %1727 = vmatprep.subr.mxu0 0.0
        %1728 = vmatpush1.msra.mxu0 0.0
        %1729 = vmatprep.subr.mxu0 0.0
        %1730 = vmatpush1.msra.mxu0 0.0
        %1731 = vmatprep.subr.mxu0 0.0
        %1732 = vmatpush1.msra.mxu0 0.0
        %1733 = vmatprep.subr.mxu0 0.0
        %1734 = vmatpush1.msra.mxu0 0.0
        %1735 = vmatprep.subr.mxu0 0.0
        %1736 = vmatpush1.msra.mxu0 0.0
        %1737 = vmatprep.subr.mxu0 0.0
        %1738 = vmatpush1.msra.mxu0 0.0
        %1739 = vmatprep.subr.mxu0 0.0
        %1740 = vmatpush1.msra.mxu0 0.0
        %1741 = vmatprep.subr.mxu0 0.0
        %1742 = vmatpush1.msra.mxu0 0.0
        %1743 = vmatprep.subr.mxu0 0.0
        %1744 = vmatpush1.msra.mxu0 0.0
        %1745 = vmatprep.subr.mxu0 0.0
        %1746 = vmatpush1.msra.mxu0 0.0
        %1747 = vmatprep.subr.mxu0 0.0
        %v1748 = vand.u32 %v1715, 4294901760
        %1749 = vmatpush1.msra.mxu0 %v1748
        %1750 = vmatprep.subr.mxu0 0.0
        %1751 = vmatpush2.msra.mxu0 0.0
        %1752 = vmatprep.subr.mxu0 0.0
        %1753 = vmatpush2.msra.mxu0 0.0
        %1754 = vmatprep.subr.mxu0 0.0
        %1755 = vmatpush2.msra.mxu0 0.0
        %1756 = vmatprep.subr.mxu0 0.0
        %1757 = vmatpush2.msra.mxu0 0.0
        %1758 = vmatprep.subr.mxu0 0.0
        %1759 = vmatpush2.msra.mxu0 0.0
        %1760 = vmatprep.subr.mxu0 0.0
        %1761 = vmatpush2.msra.mxu0 0.0
        %1762 = vmatprep.subr.mxu0 0.0
        %1763 = vmatpush2.msra.mxu0 0.0
        %1764 = vmatprep.subr.mxu0 0.0
        %1765 = vmatpush2.msra.mxu0 0.0
        %1766 = vmatprep.subr.mxu0 0.0
        %1767 = vmatpush2.msra.mxu0 0.0
        %1768 = vmatprep.subr.mxu0 0.0
        %1769 = vmatpush2.msra.mxu0 0.0
        %1770 = vmatprep.subr.mxu0 0.0
        %1771 = vmatpush2.msra.mxu0 0.0
        %1772 = vmatprep.subr.mxu0 0.0
        %1773 = vmatpush2.msra.mxu0 0.0
        %1774 = vmatprep.subr.mxu0 0.0
        %1775 = vmatpush2.msra.mxu0 0.0
        %1776 = vmatprep.subr.mxu0 0.0
        %1777 = vmatpush2.msra.mxu0 0.0
        %1778 = vmatprep.subr.mxu0 0.0
        %1779 = vmatpush2.msra.mxu0 0.0
        %1780 = vmatprep.subr.mxu0 0.0
        %1781 = vmatpush2.msra.mxu0 0.0
        %1782 = vmatprep.mubr.f32.mxu0 0.0
        %v1783 = vand.u32 %v1666, 4294901760
        %v1784 = vsub.f32 %v1666, %v1783
        %v1785 = vand.u32 %v1784, 4294901760
        %v1786 = vsub.f32 %v1784, %v1785
        %v1787 = vand.u32 %v1786, 4294901760
        %1788 = vmatmul.mubr.f32.gmra.mxu0 %v1787
        %v1789 = vpop.f32.mrf.mxu0
        %v1790 = vadd.f32 0.0, %v1789
        %v1791 = vpop.f32.mrf.mxu0
        %1792 = vmatprep.mubr.f32.mxu0 0.0
        %v1793 = vand.u32 %v1669, 4294901760
        %v1794 = vsub.f32 %v1669, %v1793
        %v1795 = vand.u32 %v1794, 4294901760
        %v1796 = vsub.f32 %v1794, %v1795
        %v1797 = vand.u32 %v1796, 4294901760
        %1798 = vmatmul.mubr.f32.gmra.mxu0 %v1797
        %v1799 = vpop.f32.mrf.mxu0
        %v1800 = vadd.f32 0.0, %v1799
        %v1801 = vpop.f32.mrf.mxu0
        %1802 = vmatprep.mubr.f32.mxu0 0.0
        %v1803 = vand.u32 %v1672, 4294901760
        %v1804 = vsub.f32 %v1672, %v1803
        %v1805 = vand.u32 %v1804, 4294901760
        %v1806 = vsub.f32 %v1804, %v1805
        %v1807 = vand.u32 %v1806, 4294901760
        %1808 = vmatmul.mubr.f32.gmra.mxu0 %v1807
        %v1809 = vpop.f32.mrf.mxu0
        %v1810 = vadd.f32 0.0, %v1809
        %v1811 = vpop.f32.mrf.mxu0
        %1812 = vmatprep.mubr.f32.mxu0 0.0
        %v1813 = vand.u32 %v1675, 4294901760
        %v1814 = vsub.f32 %v1675, %v1813
        %v1815 = vand.u32 %v1814, 4294901760
        %v1816 = vsub.f32 %v1814, %v1815
        %v1817 = vand.u32 %v1816, 4294901760
        %1818 = vmatmul.mubr.f32.gmra.mxu0 %v1817
        %v1819 = vpop.f32.mrf.mxu0
        %v1820 = vadd.f32 0.0, %v1819
        %v1821 = vpop.f32.mrf.mxu0
        %1822 = vmatprep.mubr.f32.mxu0 0.0
        %v1823 = vand.u32 %v1678, 4294901760
        %v1824 = vsub.f32 %v1678, %v1823
        %v1825 = vand.u32 %v1824, 4294901760
        %v1826 = vsub.f32 %v1824, %v1825
        %v1827 = vand.u32 %v1826, 4294901760
        %1828 = vmatmul.mubr.f32.gmra.mxu0 %v1827
        %v1829 = vpop.f32.mrf.mxu0
        %v1830 = vadd.f32 0.0, %v1829
        %v1831 = vpop.f32.mrf.mxu0
        %1832 = vmatprep.mubr.f32.mxu0 0.0
        %v1833 = vand.u32 %v1681, 4294901760
        %v1834 = vsub.f32 %v1681, %v1833
        %v1835 = vand.u32 %v1834, 4294901760
        %v1836 = vsub.f32 %v1834, %v1835
        %v1837 = vand.u32 %v1836, 4294901760
        %1838 = vmatmul.mubr.f32.gmra.mxu0 %v1837
        %v1839 = vpop.f32.mrf.mxu0
        %v1840 = vadd.f32 0.0, %v1839
        %v1841 = vpop.f32.mrf.mxu0
        %1842 = vmatprep.mubr.f32.mxu0 0.0
        %v1843 = vand.u32 %v1684, 4294901760
        %v1844 = vsub.f32 %v1684, %v1843
        %v1845 = vand.u32 %v1844, 4294901760
        %v1846 = vsub.f32 %v1844, %v1845
        %v1847 = vand.u32 %v1846, 4294901760
        %1848 = vmatmul.mubr.f32.gmra.mxu0 %v1847
        %v1849 = vpop.f32.mrf.mxu0
        %v1850 = vadd.f32 0.0, %v1849
        %v1851 = vpop.f32.mrf.mxu0
        %1852 = vmatprep.mubr.f32.mxu0 0.0
        %v1853 = vand.u32 %v1687, 4294901760
        %v1854 = vsub.f32 %v1687, %v1853
        %v1855 = vand.u32 %v1854, 4294901760
        %v1856 = vsub.f32 %v1854, %v1855
        %v1857 = vand.u32 %v1856, 4294901760
        %1858 = vmatmul.mubr.f32.gmra.mxu0 %v1857
        %v1859 = vpop.f32.mrf.mxu0
        %v1860 = vadd.f32 0.0, %v1859
        %v1861 = vpop.f32.mrf.mxu0
        %1862 = vmatprep.mubr.f32.mxu0 0.0
        %v1863 = vand.u32 %v1690, 4294901760
        %v1864 = vsub.f32 %v1690, %v1863
        %v1865 = vand.u32 %v1864, 4294901760
        %v1866 = vsub.f32 %v1864, %v1865
        %v1867 = vand.u32 %v1866, 4294901760
        %1868 = vmatmul.mubr.f32.gmra.mxu0 %v1867
        %v1869 = vpop.f32.mrf.mxu0
        %v1870 = vadd.f32 0.0, %v1869
        %v1871 = vpop.f32.mrf.mxu0
        %1872 = vmatprep.mubr.f32.mxu0 0.0
        %v1873 = vand.u32 %v1693, 4294901760
        %v1874 = vsub.f32 %v1693, %v1873
        %v1875 = vand.u32 %v1874, 4294901760
        %v1876 = vsub.f32 %v1874, %v1875
        %v1877 = vand.u32 %v1876, 4294901760
        %1878 = vmatmul.mubr.f32.gmra.mxu0 %v1877
        %v1879 = vpop.f32.mrf.mxu0
        %v1880 = vadd.f32 0.0, %v1879
        %v1881 = vpop.f32.mrf.mxu0
        %1882 = vmatprep.mubr.f32.mxu0 0.0
        %v1883 = vand.u32 %v1696, 4294901760
        %v1884 = vsub.f32 %v1696, %v1883
        %v1885 = vand.u32 %v1884, 4294901760
        %v1886 = vsub.f32 %v1884, %v1885
        %v1887 = vand.u32 %v1886, 4294901760
        %1888 = vmatmul.mubr.f32.gmra.mxu0 %v1887
        %v1889 = vpop.f32.mrf.mxu0
        %v1890 = vadd.f32 0.0, %v1889
        %v1891 = vpop.f32.mrf.mxu0
        %1892 = vmatprep.mubr.f32.mxu0 0.0
        %v1893 = vand.u32 %v1699, 4294901760
        %v1894 = vsub.f32 %v1699, %v1893
        %v1895 = vand.u32 %v1894, 4294901760
        %v1896 = vsub.f32 %v1894, %v1895
        %v1897 = vand.u32 %v1896, 4294901760
        %1898 = vmatmul.mubr.f32.gmra.mxu0 %v1897
        %v1899 = vpop.f32.mrf.mxu0
        %v1900 = vadd.f32 0.0, %v1899
        %v1901 = vpop.f32.mrf.mxu0
        %1902 = vmatprep.mubr.f32.mxu0 0.0
        %v1903 = vand.u32 %v1702, 4294901760
        %v1904 = vsub.f32 %v1702, %v1903
        %v1905 = vand.u32 %v1904, 4294901760
        %v1906 = vsub.f32 %v1904, %v1905
        %v1907 = vand.u32 %v1906, 4294901760
        %1908 = vmatmul.mubr.f32.gmra.mxu0 %v1907
        %v1909 = vpop.f32.mrf.mxu0
        %v1910 = vadd.f32 0.0, %v1909
        %v1911 = vpop.f32.mrf.mxu0
        %1912 = vmatprep.mubr.f32.mxu0 0.0
        %v1913 = vand.u32 %v1705, 4294901760
        %v1914 = vsub.f32 %v1705, %v1913
        %v1915 = vand.u32 %v1914, 4294901760
        %v1916 = vsub.f32 %v1914, %v1915
        %v1917 = vand.u32 %v1916, 4294901760
        %1918 = vmatmul.mubr.f32.gmra.mxu0 %v1917
        %v1919 = vpop.f32.mrf.mxu0
        %v1920 = vadd.f32 0.0, %v1919
        %v1921 = vpop.f32.mrf.mxu0
        %1922 = vmatprep.mubr.f32.mxu0 0.0
        %v1923 = vand.u32 %v1708, 4294901760
        %v1924 = vsub.f32 %v1708, %v1923
        %v1925 = vand.u32 %v1924, 4294901760
        %v1926 = vsub.f32 %v1924, %v1925
        %v1927 = vand.u32 %v1926, 4294901760
        %1928 = vmatmul.mubr.f32.gmra.mxu0 %v1927
        %v1929 = vpop.f32.mrf.mxu0
        %v1930 = vadd.f32 0.0, %v1929
        %v1931 = vpop.f32.mrf.mxu0
        %1932 = vmatprep.mubr.f32.mxu0 0.0
        %v1933 = vand.u32 %v1711, 4294901760
        %v1934 = vsub.f32 %v1711, %v1933
        %v1935 = vand.u32 %v1934, 4294901760
        %v1936 = vsub.f32 %v1934, %v1935
        %v1937 = vand.u32 %v1936, 4294901760
        %1938 = vmatmul.mubr.f32.gmra.mxu0 %v1937
        %v1939 = vpop.f32.mrf.mxu0
        %v1940 = vadd.f32 0.0, %v1939
        %v1941 = vpop.f32.mrf.mxu0
        %1942 = vdwg.mxu0
        %1943 = vmatprep.subr.mxu0 0.0
        %1944 = vmatpush1.msra.mxu0 0.0
        %1945 = vmatprep.subr.mxu0 0.0
        %1946 = vmatpush1.msra.mxu0 0.0
        %1947 = vmatprep.subr.mxu0 0.0
        %1948 = vmatpush1.msra.mxu0 0.0
        %1949 = vmatprep.subr.mxu0 0.0
        %1950 = vmatpush1.msra.mxu0 0.0
        %1951 = vmatprep.subr.mxu0 0.0
        %1952 = vmatpush1.msra.mxu0 0.0
        %1953 = vmatprep.subr.mxu0 0.0
        %1954 = vmatpush1.msra.mxu0 0.0
        %1955 = vmatprep.subr.mxu0 0.0
        %1956 = vmatpush1.msra.mxu0 0.0
        %1957 = vmatprep.subr.mxu0 0.0
        %1958 = vmatpush1.msra.mxu0 0.0
        %1959 = vmatprep.subr.mxu0 0.0
        %1960 = vmatpush1.msra.mxu0 0.0
        %1961 = vmatprep.subr.mxu0 0.0
        %1962 = vmatpush1.msra.mxu0 0.0
        %1963 = vmatprep.subr.mxu0 0.0
        %1964 = vmatpush1.msra.mxu0 0.0
        %1965 = vmatprep.subr.mxu0 0.0
        %1966 = vmatpush1.msra.mxu0 0.0
        %1967 = vmatprep.subr.mxu0 0.0
        %1968 = vmatpush1.msra.mxu0 0.0
        %1969 = vmatprep.subr.mxu0 0.0
        %1970 = vmatpush1.msra.mxu0 0.0
        %1971 = vmatprep.subr.mxu0 0.0
        %1972 = vmatpush1.msra.mxu0 0.0
        %1973 = vmatprep.subr.mxu0 0.0
        %v1974 = vand.u32 %v1715, 4294901760
        %v1975 = vsub.f32 %v1715, %v1974
        %v1976 = vand.u32 %v1975, 4294901760
        %v1977 = vsub.f32 %v1975, %v1976
        %v1978 = vand.u32 %v1977, 4294901760
        %1979 = vmatpush1.msra.mxu0 %v1978
        %1980 = vmatprep.subr.mxu0 0.0
        %1981 = vmatpush2.msra.mxu0 0.0
        %1982 = vmatprep.subr.mxu0 0.0
        %1983 = vmatpush2.msra.mxu0 0.0
        %1984 = vmatprep.subr.mxu0 0.0
        %1985 = vmatpush2.msra.mxu0 0.0
        %1986 = vmatprep.subr.mxu0 0.0
        %1987 = vmatpush2.msra.mxu0 0.0
        %1988 = vmatprep.subr.mxu0 0.0
        %1989 = vmatpush2.msra.mxu0 0.0
        %1990 = vmatprep.subr.mxu0 0.0
        %1991 = vmatpush2.msra.mxu0 0.0
        %1992 = vmatprep.subr.mxu0 0.0
        %1993 = vmatpush2.msra.mxu0 0.0
        %1994 = vmatprep.subr.mxu0 0.0
        %1995 = vmatpush2.msra.mxu0 0.0
        %1996 = vmatprep.subr.mxu0 0.0
        %1997 = vmatpush2.msra.mxu0 0.0
        %1998 = vmatprep.subr.mxu0 0.0
        %1999 = vmatpush2.msra.mxu0 0.0
        %2000 = vmatprep.subr.mxu0 0.0
        %2001 = vmatpush2.msra.mxu0 0.0
        %2002 = vmatprep.subr.mxu0 0.0
        %2003 = vmatpush2.msra.mxu0 0.0
        %2004 = vmatprep.subr.mxu0 0.0
        %2005 = vmatpush2.msra.mxu0 0.0
        %2006 = vmatprep.subr.mxu0 0.0
        %2007 = vmatpush2.msra.mxu0 0.0
        %2008 = vmatprep.subr.mxu0 0.0
        %2009 = vmatpush2.msra.mxu0 0.0
        %2010 = vmatprep.subr.mxu0 0.0
        %2011 = vmatpush2.msra.mxu0 0.0
        %2012 = vmatprep.mubr.f32.mxu0 0.0
        %v2013 = vand.u32 %v1666, 4294901760
        %2014 = vmatmul.mubr.f32.gmra.mxu0 %v2013
        %v2015 = vpop.f32.mrf.mxu0
        %v2016 = vadd.f32 %v1790, %v2015
        %v2017 = vpop.f32.mrf.mxu0
        %2018 = vmatprep.mubr.f32.mxu0 0.0
        %v2019 = vand.u32 %v1669, 4294901760
        %2020 = vmatmul.mubr.f32.gmra.mxu0 %v2019
        %v2021 = vpop.f32.mrf.mxu0
        %v2022 = vadd.f32 %v1800, %v2021
        %v2023 = vpop.f32.mrf.mxu0
        %2024 = vmatprep.mubr.f32.mxu0 0.0
        %v2025 = vand.u32 %v1672, 4294901760
        %2026 = vmatmul.mubr.f32.gmra.mxu0 %v2025
        %v2027 = vpop.f32.mrf.mxu0
        %v2028 = vadd.f32 %v1810, %v2027
        %v2029 = vpop.f32.mrf.mxu0
        %2030 = vmatprep.mubr.f32.mxu0 0.0
        %v2031 = vand.u32 %v1675, 4294901760
        %2032 = vmatmul.mubr.f32.gmra.mxu0 %v2031
        %v2033 = vpop.f32.mrf.mxu0
        %v2034 = vadd.f32 %v1820, %v2033
        %v2035 = vpop.f32.mrf.mxu0
        %2036 = vmatprep.mubr.f32.mxu0 0.0
        %v2037 = vand.u32 %v1678, 4294901760
        %2038 = vmatmul.mubr.f32.gmra.mxu0 %v2037
        %v2039 = vpop.f32.mrf.mxu0
        %v2040 = vadd.f32 %v1830, %v2039
        %v2041 = vpop.f32.mrf.mxu0
        %2042 = vmatprep.mubr.f32.mxu0 0.0
        %v2043 = vand.u32 %v1681, 4294901760
        %2044 = vmatmul.mubr.f32.gmra.mxu0 %v2043
        %v2045 = vpop.f32.mrf.mxu0
        %v2046 = vadd.f32 %v1840, %v2045
        %v2047 = vpop.f32.mrf.mxu0
        %2048 = vmatprep.mubr.f32.mxu0 0.0
        %v2049 = vand.u32 %v1684, 4294901760
        %2050 = vmatmul.mubr.f32.gmra.mxu0 %v2049
        %v2051 = vpop.f32.mrf.mxu0
        %v2052 = vadd.f32 %v1850, %v2051
        %v2053 = vpop.f32.mrf.mxu0
        %2054 = vmatprep.mubr.f32.mxu0 0.0
        %v2055 = vand.u32 %v1687, 4294901760
        %2056 = vmatmul.mubr.f32.gmra.mxu0 %v2055
        %v2057 = vpop.f32.mrf.mxu0
        %v2058 = vadd.f32 %v1860, %v2057
        %v2059 = vpop.f32.mrf.mxu0
        %2060 = vmatprep.mubr.f32.mxu0 0.0
        %v2061 = vand.u32 %v1690, 4294901760
        %2062 = vmatmul.mubr.f32.gmra.mxu0 %v2061
        %v2063 = vpop.f32.mrf.mxu0
        %v2064 = vadd.f32 %v1870, %v2063
        %v2065 = vpop.f32.mrf.mxu0
        %2066 = vmatprep.mubr.f32.mxu0 0.0
        %v2067 = vand.u32 %v1693, 4294901760
        %2068 = vmatmul.mubr.f32.gmra.mxu0 %v2067
        %v2069 = vpop.f32.mrf.mxu0
        %v2070 = vadd.f32 %v1880, %v2069
        %v2071 = vpop.f32.mrf.mxu0
        %2072 = vmatprep.mubr.f32.mxu0 0.0
        %v2073 = vand.u32 %v1696, 4294901760
        %2074 = vmatmul.mubr.f32.gmra.mxu0 %v2073
        %v2075 = vpop.f32.mrf.mxu0
        %v2076 = vadd.f32 %v1890, %v2075
        %v2077 = vpop.f32.mrf.mxu0
        %2078 = vmatprep.mubr.f32.mxu0 0.0
        %v2079 = vand.u32 %v1699, 4294901760
        %2080 = vmatmul.mubr.f32.gmra.mxu0 %v2079
        %v2081 = vpop.f32.mrf.mxu0
        %v2082 = vadd.f32 %v1900, %v2081
        %v2083 = vpop.f32.mrf.mxu0
        %2084 = vmatprep.mubr.f32.mxu0 0.0
        %v2085 = vand.u32 %v1702, 4294901760
        %2086 = vmatmul.mubr.f32.gmra.mxu0 %v2085
        %v2087 = vpop.f32.mrf.mxu0
        %v2088 = vadd.f32 %v1910, %v2087
        %v2089 = vpop.f32.mrf.mxu0
        %2090 = vmatprep.mubr.f32.mxu0 0.0
        %v2091 = vand.u32 %v1705, 4294901760
        %2092 = vmatmul.mubr.f32.gmra.mxu0 %v2091
        %v2093 = vpop.f32.mrf.mxu0
        %v2094 = vadd.f32 %v1920, %v2093
        %v2095 = vpop.f32.mrf.mxu0
        %2096 = vmatprep.mubr.f32.mxu0 0.0
        %v2097 = vand.u32 %v1708, 4294901760
        %2098 = vmatmul.mubr.f32.gmra.mxu0 %v2097
        %v2099 = vpop.f32.mrf.mxu0
        %v2100 = vadd.f32 %v1930, %v2099
        %v2101 = vpop.f32.mrf.mxu0
        %2102 = vmatprep.mubr.f32.mxu0 0.0
        %v2103 = vand.u32 %v1711, 4294901760
        %2104 = vmatmul.mubr.f32.gmra.mxu0 %v2103
        %v2105 = vpop.f32.mrf.mxu0
        %v2106 = vadd.f32 %v1940, %v2105
        %v2107 = vpop.f32.mrf.mxu0
        %2108 = vdwg.mxu0
        %2109 = vmatprep.subr.mxu0 0.0
        %2110 = vmatpush1.msra.mxu0 0.0
        %2111 = vmatprep.subr.mxu0 0.0
        %2112 = vmatpush1.msra.mxu0 0.0
        %2113 = vmatprep.subr.mxu0 0.0
        %2114 = vmatpush1.msra.mxu0 0.0
        %2115 = vmatprep.subr.mxu0 0.0
        %2116 = vmatpush1.msra.mxu0 0.0
        %2117 = vmatprep.subr.mxu0 0.0
        %2118 = vmatpush1.msra.mxu0 0.0
        %2119 = vmatprep.subr.mxu0 0.0
        %2120 = vmatpush1.msra.mxu0 0.0
        %2121 = vmatprep.subr.mxu0 0.0
        %2122 = vmatpush1.msra.mxu0 0.0
        %2123 = vmatprep.subr.mxu0 0.0
        %2124 = vmatpush1.msra.mxu0 0.0
        %2125 = vmatprep.subr.mxu0 0.0
        %2126 = vmatpush1.msra.mxu0 0.0
        %2127 = vmatprep.subr.mxu0 0.0
        %2128 = vmatpush1.msra.mxu0 0.0
        %2129 = vmatprep.subr.mxu0 0.0
        %2130 = vmatpush1.msra.mxu0 0.0
        %2131 = vmatprep.subr.mxu0 0.0
        %2132 = vmatpush1.msra.mxu0 0.0
        %2133 = vmatprep.subr.mxu0 0.0
        %2134 = vmatpush1.msra.mxu0 0.0
        %2135 = vmatprep.subr.mxu0 0.0
        %2136 = vmatpush1.msra.mxu0 0.0
        %2137 = vmatprep.subr.mxu0 0.0
        %2138 = vmatpush1.msra.mxu0 0.0
        %2139 = vmatprep.subr.mxu0 0.0
        %v2140 = vand.u32 %v1715, 4294901760
        %v2141 = vsub.f32 %v1715, %v2140
        %2142 = vmatpush1.msra.mxu0 %v2141
        %2143 = vmatprep.subr.mxu0 0.0
        %2144 = vmatpush2.msra.mxu0 0.0
        %2145 = vmatprep.subr.mxu0 0.0
        %2146 = vmatpush2.msra.mxu0 0.0
        %2147 = vmatprep.subr.mxu0 0.0
        %2148 = vmatpush2.msra.mxu0 0.0
        %2149 = vmatprep.subr.mxu0 0.0
        %2150 = vmatpush2.msra.mxu0 0.0
        %2151 = vmatprep.subr.mxu0 0.0
        %2152 = vmatpush2.msra.mxu0 0.0
        %2153 = vmatprep.subr.mxu0 0.0
        %2154 = vmatpush2.msra.mxu0 0.0
        %2155 = vmatprep.subr.mxu0 0.0
        %2156 = vmatpush2.msra.mxu0 0.0
        %2157 = vmatprep.subr.mxu0 0.0
        %2158 = vmatpush2.msra.mxu0 0.0
        %2159 = vmatprep.subr.mxu0 0.0
        %2160 = vmatpush2.msra.mxu0 0.0
        %2161 = vmatprep.subr.mxu0 0.0
        %2162 = vmatpush2.msra.mxu0 0.0
        %2163 = vmatprep.subr.mxu0 0.0
        %2164 = vmatpush2.msra.mxu0 0.0
        %2165 = vmatprep.subr.mxu0 0.0
        %2166 = vmatpush2.msra.mxu0 0.0
        %2167 = vmatprep.subr.mxu0 0.0
        %2168 = vmatpush2.msra.mxu0 0.0
        %2169 = vmatprep.subr.mxu0 0.0
        %2170 = vmatpush2.msra.mxu0 0.0
        %2171 = vmatprep.subr.mxu0 0.0
        %2172 = vmatpush2.msra.mxu0 0.0
        %2173 = vmatprep.subr.mxu0 0.0
        %2174 = vmatpush2.msra.mxu0 0.0
        %2175 = vmatprep.mubr.f32.mxu0 0.0
        %v2176 = vand.u32 %v1666, 4294901760
        %v2177 = vsub.f32 %v1666, %v2176
        %2178 = vmatmul.mubr.f32.gmra.mxu0 %v2177
        %v2179 = vpop.f32.mrf.mxu0
        %v2180 = vadd.f32 %v2016, %v2179
        %v2181 = vpop.f32.mrf.mxu0
        %2182 = vmatprep.mubr.f32.mxu0 0.0
        %v2183 = vand.u32 %v1669, 4294901760
        %v2184 = vsub.f32 %v1669, %v2183
        %2185 = vmatmul.mubr.f32.gmra.mxu0 %v2184
        %v2186 = vpop.f32.mrf.mxu0
        %v2187 = vadd.f32 %v2022, %v2186
        %v2188 = vpop.f32.mrf.mxu0
        %2189 = vmatprep.mubr.f32.mxu0 0.0
        %v2190 = vand.u32 %v1672, 4294901760
        %v2191 = vsub.f32 %v1672, %v2190
        %2192 = vmatmul.mubr.f32.gmra.mxu0 %v2191
        %v2193 = vpop.f32.mrf.mxu0
        %v2194 = vadd.f32 %v2028, %v2193
        %v2195 = vpop.f32.mrf.mxu0
        %2196 = vmatprep.mubr.f32.mxu0 0.0
        %v2197 = vand.u32 %v1675, 4294901760
        %v2198 = vsub.f32 %v1675, %v2197
        %2199 = vmatmul.mubr.f32.gmra.mxu0 %v2198
        %v2200 = vpop.f32.mrf.mxu0
        %v2201 = vadd.f32 %v2034, %v2200
        %v2202 = vpop.f32.mrf.mxu0
        %2203 = vmatprep.mubr.f32.mxu0 0.0
        %v2204 = vand.u32 %v1678, 4294901760
        %v2205 = vsub.f32 %v1678, %v2204
        %2206 = vmatmul.mubr.f32.gmra.mxu0 %v2205
        %v2207 = vpop.f32.mrf.mxu0
        %v2208 = vadd.f32 %v2040, %v2207
        %v2209 = vpop.f32.mrf.mxu0
        %2210 = vmatprep.mubr.f32.mxu0 0.0
        %v2211 = vand.u32 %v1681, 4294901760
        %v2212 = vsub.f32 %v1681, %v2211
        %2213 = vmatmul.mubr.f32.gmra.mxu0 %v2212
        %v2214 = vpop.f32.mrf.mxu0
        %v2215 = vadd.f32 %v2046, %v2214
        %v2216 = vpop.f32.mrf.mxu0
        %2217 = vmatprep.mubr.f32.mxu0 0.0
        %v2218 = vand.u32 %v1684, 4294901760
        %v2219 = vsub.f32 %v1684, %v2218
        %2220 = vmatmul.mubr.f32.gmra.mxu0 %v2219
        %v2221 = vpop.f32.mrf.mxu0
        %v2222 = vadd.f32 %v2052, %v2221
        %v2223 = vpop.f32.mrf.mxu0
        %2224 = vmatprep.mubr.f32.mxu0 0.0
        %v2225 = vand.u32 %v1687, 4294901760
        %v2226 = vsub.f32 %v1687, %v2225
        %2227 = vmatmul.mubr.f32.gmra.mxu0 %v2226
        %v2228 = vpop.f32.mrf.mxu0
        %v2229 = vadd.f32 %v2058, %v2228
        %v2230 = vpop.f32.mrf.mxu0
        %2231 = vmatprep.mubr.f32.mxu0 0.0
        %v2232 = vand.u32 %v1690, 4294901760
        %v2233 = vsub.f32 %v1690, %v2232
        %2234 = vmatmul.mubr.f32.gmra.mxu0 %v2233
        %v2235 = vpop.f32.mrf.mxu0
        %v2236 = vadd.f32 %v2064, %v2235
        %v2237 = vpop.f32.mrf.mxu0
        %2238 = vmatprep.mubr.f32.mxu0 0.0
        %v2239 = vand.u32 %v1693, 4294901760
        %v2240 = vsub.f32 %v1693, %v2239
        %2241 = vmatmul.mubr.f32.gmra.mxu0 %v2240
        %v2242 = vpop.f32.mrf.mxu0
        %v2243 = vadd.f32 %v2070, %v2242
        %v2244 = vpop.f32.mrf.mxu0
        %2245 = vmatprep.mubr.f32.mxu0 0.0
        %v2246 = vand.u32 %v1696, 4294901760
        %v2247 = vsub.f32 %v1696, %v2246
        %2248 = vmatmul.mubr.f32.gmra.mxu0 %v2247
        %v2249 = vpop.f32.mrf.mxu0
        %v2250 = vadd.f32 %v2076, %v2249
        %v2251 = vpop.f32.mrf.mxu0
        %2252 = vmatprep.mubr.f32.mxu0 0.0
        %v2253 = vand.u32 %v1699, 4294901760
        %v2254 = vsub.f32 %v1699, %v2253
        %2255 = vmatmul.mubr.f32.gmra.mxu0 %v2254
        %v2256 = vpop.f32.mrf.mxu0
        %v2257 = vadd.f32 %v2082, %v2256
        %v2258 = vpop.f32.mrf.mxu0
        %2259 = vmatprep.mubr.f32.mxu0 0.0
        %v2260 = vand.u32 %v1702, 4294901760
        %v2261 = vsub.f32 %v1702, %v2260
        %2262 = vmatmul.mubr.f32.gmra.mxu0 %v2261
        %v2263 = vpop.f32.mrf.mxu0
        %v2264 = vadd.f32 %v2088, %v2263
        %v2265 = vpop.f32.mrf.mxu0
        %2266 = vmatprep.mubr.f32.mxu0 0.0
        %v2267 = vand.u32 %v1705, 4294901760
        %v2268 = vsub.f32 %v1705, %v2267
        %2269 = vmatmul.mubr.f32.gmra.mxu0 %v2268
        %v2270 = vpop.f32.mrf.mxu0
        %v2271 = vadd.f32 %v2094, %v2270
        %v2272 = vpop.f32.mrf.mxu0
        %2273 = vmatprep.mubr.f32.mxu0 0.0
        %v2274 = vand.u32 %v1708, 4294901760
        %v2275 = vsub.f32 %v1708, %v2274
        %2276 = vmatmul.mubr.f32.gmra.mxu0 %v2275
        %v2277 = vpop.f32.mrf.mxu0
        %v2278 = vadd.f32 %v2100, %v2277
        %v2279 = vpop.f32.mrf.mxu0
        %2280 = vmatprep.mubr.f32.mxu0 0.0
        %v2281 = vand.u32 %v1711, 4294901760
        %v2282 = vsub.f32 %v1711, %v2281
        %2283 = vmatmul.mubr.f32.gmra.mxu0 %v2282
        %v2284 = vpop.f32.mrf.mxu0
        %v2285 = vadd.f32 %v2106, %v2284
        %v2286 = vpop.f32.mrf.mxu0
        %2287 = vdwg.mxu0
        %2288 = vmatprep.subr.mxu0 0.0
        %2289 = vmatpush1.msra.mxu0 0.0
        %2290 = vmatprep.subr.mxu0 0.0
        %2291 = vmatpush1.msra.mxu0 0.0
        %2292 = vmatprep.subr.mxu0 0.0
        %2293 = vmatpush1.msra.mxu0 0.0
        %2294 = vmatprep.subr.mxu0 0.0
        %2295 = vmatpush1.msra.mxu0 0.0
        %2296 = vmatprep.subr.mxu0 0.0
        %2297 = vmatpush1.msra.mxu0 0.0
        %2298 = vmatprep.subr.mxu0 0.0
        %2299 = vmatpush1.msra.mxu0 0.0
        %2300 = vmatprep.subr.mxu0 0.0
        %2301 = vmatpush1.msra.mxu0 0.0
        %2302 = vmatprep.subr.mxu0 0.0
        %2303 = vmatpush1.msra.mxu0 0.0
        %2304 = vmatprep.subr.mxu0 0.0
        %2305 = vmatpush1.msra.mxu0 0.0
        %2306 = vmatprep.subr.mxu0 0.0
        %2307 = vmatpush1.msra.mxu0 0.0
        %2308 = vmatprep.subr.mxu0 0.0
        %2309 = vmatpush1.msra.mxu0 0.0
        %2310 = vmatprep.subr.mxu0 0.0
        %2311 = vmatpush1.msra.mxu0 0.0
        %2312 = vmatprep.subr.mxu0 0.0
        %2313 = vmatpush1.msra.mxu0 0.0
        %2314 = vmatprep.subr.mxu0 0.0
        %2315 = vmatpush1.msra.mxu0 0.0
        %2316 = vmatprep.subr.mxu0 0.0
        %2317 = vmatpush1.msra.mxu0 0.0
        %2318 = vmatprep.subr.mxu0 0.0
        %v2319 = vand.u32 %v1715, 4294901760
        %2320 = vmatpush1.msra.mxu0 %v2319
        %2321 = vmatprep.subr.mxu0 0.0
        %2322 = vmatpush2.msra.mxu0 0.0
        %2323 = vmatprep.subr.mxu0 0.0
        %2324 = vmatpush2.msra.mxu0 0.0
        %2325 = vmatprep.subr.mxu0 0.0
        %2326 = vmatpush2.msra.mxu0 0.0
        %2327 = vmatprep.subr.mxu0 0.0
        %2328 = vmatpush2.msra.mxu0 0.0
        %2329 = vmatprep.subr.mxu0 0.0
        %2330 = vmatpush2.msra.mxu0 0.0
        %2331 = vmatprep.subr.mxu0 0.0
        %2332 = vmatpush2.msra.mxu0 0.0
        %2333 = vmatprep.subr.mxu0 0.0
        %2334 = vmatpush2.msra.mxu0 0.0
        %2335 = vmatprep.subr.mxu0 0.0
        %2336 = vmatpush2.msra.mxu0 0.0
        %2337 = vmatprep.subr.mxu0 0.0
        %2338 = vmatpush2.msra.mxu0 0.0
        %2339 = vmatprep.subr.mxu0 0.0
        %2340 = vmatpush2.msra.mxu0 0.0
        %2341 = vmatprep.subr.mxu0 0.0
        %2342 = vmatpush2.msra.mxu0 0.0
        %2343 = vmatprep.subr.mxu0 0.0
        %2344 = vmatpush2.msra.mxu0 0.0
        %2345 = vmatprep.subr.mxu0 0.0
        %2346 = vmatpush2.msra.mxu0 0.0
        %2347 = vmatprep.subr.mxu0 0.0
        %2348 = vmatpush2.msra.mxu0 0.0
        %2349 = vmatprep.subr.mxu0 0.0
        %2350 = vmatpush2.msra.mxu0 0.0
        %2351 = vmatprep.subr.mxu0 0.0
        %2352 = vmatpush2.msra.mxu0 0.0
        %2353 = vmatprep.mubr.f32.mxu0 0.0
        %v2354 = vand.u32 %v1666, 4294901760
        %v2355 = vsub.f32 %v1666, %v2354
        %v2356 = vand.u32 %v2355, 4294901760
        %2357 = vmatmul.mubr.f32.gmra.mxu0 %v2356
        %v2358 = vpop.f32.mrf.mxu0
        %v2359 = vadd.f32 %v2180, %v2358
        %v2360 = vpop.f32.mrf.mxu0
        %2361 = vmatprep.mubr.f32.mxu0 0.0
        %v2362 = vand.u32 %v1669, 4294901760
        %v2363 = vsub.f32 %v1669, %v2362
        %v2364 = vand.u32 %v2363, 4294901760
        %2365 = vmatmul.mubr.f32.gmra.mxu0 %v2364
        %v2366 = vpop.f32.mrf.mxu0
        %v2367 = vadd.f32 %v2187, %v2366
        %v2368 = vpop.f32.mrf.mxu0
        %2369 = vmatprep.mubr.f32.mxu0 0.0
        %v2370 = vand.u32 %v1672, 4294901760
        %v2371 = vsub.f32 %v1672, %v2370
        %v2372 = vand.u32 %v2371, 4294901760
        %2373 = vmatmul.mubr.f32.gmra.mxu0 %v2372
        %v2374 = vpop.f32.mrf.mxu0
        %v2375 = vadd.f32 %v2194, %v2374
        %v2376 = vpop.f32.mrf.mxu0
        %2377 = vmatprep.mubr.f32.mxu0 0.0
        %v2378 = vand.u32 %v1675, 4294901760
        %v2379 = vsub.f32 %v1675, %v2378
        %v2380 = vand.u32 %v2379, 4294901760
        %2381 = vmatmul.mubr.f32.gmra.mxu0 %v2380
        %v2382 = vpop.f32.mrf.mxu0
        %v2383 = vadd.f32 %v2201, %v2382
        %v2384 = vpop.f32.mrf.mxu0
        %2385 = vmatprep.mubr.f32.mxu0 0.0
        %v2386 = vand.u32 %v1678, 4294901760
        %v2387 = vsub.f32 %v1678, %v2386
        %v2388 = vand.u32 %v2387, 4294901760
        %2389 = vmatmul.mubr.f32.gmra.mxu0 %v2388
        %v2390 = vpop.f32.mrf.mxu0
        %v2391 = vadd.f32 %v2208, %v2390
        %v2392 = vpop.f32.mrf.mxu0
        %2393 = vmatprep.mubr.f32.mxu0 0.0
        %v2394 = vand.u32 %v1681, 4294901760
        %v2395 = vsub.f32 %v1681, %v2394
        %v2396 = vand.u32 %v2395, 4294901760
        %2397 = vmatmul.mubr.f32.gmra.mxu0 %v2396
        %v2398 = vpop.f32.mrf.mxu0
        %v2399 = vadd.f32 %v2215, %v2398
        %v2400 = vpop.f32.mrf.mxu0
        %2401 = vmatprep.mubr.f32.mxu0 0.0
        %v2402 = vand.u32 %v1684, 4294901760
        %v2403 = vsub.f32 %v1684, %v2402
        %v2404 = vand.u32 %v2403, 4294901760
        %2405 = vmatmul.mubr.f32.gmra.mxu0 %v2404
        %v2406 = vpop.f32.mrf.mxu0
        %v2407 = vadd.f32 %v2222, %v2406
        %v2408 = vpop.f32.mrf.mxu0
        %2409 = vmatprep.mubr.f32.mxu0 0.0
        %v2410 = vand.u32 %v1687, 4294901760
        %v2411 = vsub.f32 %v1687, %v2410
        %v2412 = vand.u32 %v2411, 4294901760
        %2413 = vmatmul.mubr.f32.gmra.mxu0 %v2412
        %v2414 = vpop.f32.mrf.mxu0
        %v2415 = vadd.f32 %v2229, %v2414
        %v2416 = vpop.f32.mrf.mxu0
        %2417 = vmatprep.mubr.f32.mxu0 0.0
        %v2418 = vand.u32 %v1690, 4294901760
        %v2419 = vsub.f32 %v1690, %v2418
        %v2420 = vand.u32 %v2419, 4294901760
        %2421 = vmatmul.mubr.f32.gmra.mxu0 %v2420
        %v2422 = vpop.f32.mrf.mxu0
        %v2423 = vadd.f32 %v2236, %v2422
        %v2424 = vpop.f32.mrf.mxu0
        %2425 = vmatprep.mubr.f32.mxu0 0.0
        %v2426 = vand.u32 %v1693, 4294901760
        %v2427 = vsub.f32 %v1693, %v2426
        %v2428 = vand.u32 %v2427, 4294901760
        %2429 = vmatmul.mubr.f32.gmra.mxu0 %v2428
        %v2430 = vpop.f32.mrf.mxu0
        %v2431 = vadd.f32 %v2243, %v2430
        %v2432 = vpop.f32.mrf.mxu0
        %2433 = vmatprep.mubr.f32.mxu0 0.0
        %v2434 = vand.u32 %v1696, 4294901760
        %v2435 = vsub.f32 %v1696, %v2434
        %v2436 = vand.u32 %v2435, 4294901760
        %2437 = vmatmul.mubr.f32.gmra.mxu0 %v2436
        %v2438 = vpop.f32.mrf.mxu0
        %v2439 = vadd.f32 %v2250, %v2438
        %v2440 = vpop.f32.mrf.mxu0
        %2441 = vmatprep.mubr.f32.mxu0 0.0
        %v2442 = vand.u32 %v1699, 4294901760
        %v2443 = vsub.f32 %v1699, %v2442
        %v2444 = vand.u32 %v2443, 4294901760
        %2445 = vmatmul.mubr.f32.gmra.mxu0 %v2444
        %v2446 = vpop.f32.mrf.mxu0
        %v2447 = vadd.f32 %v2257, %v2446
        %v2448 = vpop.f32.mrf.mxu0
        %2449 = vmatprep.mubr.f32.mxu0 0.0
        %v2450 = vand.u32 %v1702, 4294901760
        %v2451 = vsub.f32 %v1702, %v2450
        %v2452 = vand.u32 %v2451, 4294901760
        %2453 = vmatmul.mubr.f32.gmra.mxu0 %v2452
        %v2454 = vpop.f32.mrf.mxu0
        %v2455 = vadd.f32 %v2264, %v2454
        %v2456 = vpop.f32.mrf.mxu0
        %2457 = vmatprep.mubr.f32.mxu0 0.0
        %v2458 = vand.u32 %v1705, 4294901760
        %v2459 = vsub.f32 %v1705, %v2458
        %v2460 = vand.u32 %v2459, 4294901760
        %2461 = vmatmul.mubr.f32.gmra.mxu0 %v2460
        %v2462 = vpop.f32.mrf.mxu0
        %v2463 = vadd.f32 %v2271, %v2462
        %v2464 = vpop.f32.mrf.mxu0
        %2465 = vmatprep.mubr.f32.mxu0 0.0
        %v2466 = vand.u32 %v1708, 4294901760
        %v2467 = vsub.f32 %v1708, %v2466
        %v2468 = vand.u32 %v2467, 4294901760
        %2469 = vmatmul.mubr.f32.gmra.mxu0 %v2468
        %v2470 = vpop.f32.mrf.mxu0
        %v2471 = vadd.f32 %v2278, %v2470
        %v2472 = vpop.f32.mrf.mxu0
        %2473 = vmatprep.mubr.f32.mxu0 0.0
        %v2474 = vand.u32 %v1711, 4294901760
        %v2475 = vsub.f32 %v1711, %v2474
        %v2476 = vand.u32 %v2475, 4294901760
        %2477 = vmatmul.mubr.f32.gmra.mxu0 %v2476
        %v2478 = vpop.f32.mrf.mxu0
        %v2479 = vadd.f32 %v2285, %v2478
        %v2480 = vpop.f32.mrf.mxu0
        %2481 = vdwg.mxu0
        %2482 = vmatprep.subr.mxu0 0.0
        %2483 = vmatpush1.msra.mxu0 0.0
        %2484 = vmatprep.subr.mxu0 0.0
        %2485 = vmatpush1.msra.mxu0 0.0
        %2486 = vmatprep.subr.mxu0 0.0
        %2487 = vmatpush1.msra.mxu0 0.0
        %2488 = vmatprep.subr.mxu0 0.0
        %2489 = vmatpush1.msra.mxu0 0.0
        %2490 = vmatprep.subr.mxu0 0.0
        %2491 = vmatpush1.msra.mxu0 0.0
        %2492 = vmatprep.subr.mxu0 0.0
        %2493 = vmatpush1.msra.mxu0 0.0
        %2494 = vmatprep.subr.mxu0 0.0
        %2495 = vmatpush1.msra.mxu0 0.0
        %2496 = vmatprep.subr.mxu0 0.0
        %2497 = vmatpush1.msra.mxu0 0.0
        %2498 = vmatprep.subr.mxu0 0.0
        %2499 = vmatpush1.msra.mxu0 0.0
        %2500 = vmatprep.subr.mxu0 0.0
        %2501 = vmatpush1.msra.mxu0 0.0
        %2502 = vmatprep.subr.mxu0 0.0
        %2503 = vmatpush1.msra.mxu0 0.0
        %2504 = vmatprep.subr.mxu0 0.0
        %2505 = vmatpush1.msra.mxu0 0.0
        %2506 = vmatprep.subr.mxu0 0.0
        %2507 = vmatpush1.msra.mxu0 0.0
        %2508 = vmatprep.subr.mxu0 0.0
        %2509 = vmatpush1.msra.mxu0 0.0
        %2510 = vmatprep.subr.mxu0 0.0
        %2511 = vmatpush1.msra.mxu0 0.0
        %2512 = vmatprep.subr.mxu0 0.0
        %v2513 = vand.u32 %v1715, 4294901760
        %v2514 = vsub.f32 %v1715, %v2513
        %v2515 = vand.u32 %v2514, 4294901760
        %2516 = vmatpush1.msra.mxu0 %v2515
        %2517 = vmatprep.subr.mxu0 0.0
        %2518 = vmatpush2.msra.mxu0 0.0
        %2519 = vmatprep.subr.mxu0 0.0
        %2520 = vmatpush2.msra.mxu0 0.0
        %2521 = vmatprep.subr.mxu0 0.0
        %2522 = vmatpush2.msra.mxu0 0.0
        %2523 = vmatprep.subr.mxu0 0.0
        %2524 = vmatpush2.msra.mxu0 0.0
        %2525 = vmatprep.subr.mxu0 0.0
        %2526 = vmatpush2.msra.mxu0 0.0
        %2527 = vmatprep.subr.mxu0 0.0
        %2528 = vmatpush2.msra.mxu0 0.0
        %2529 = vmatprep.subr.mxu0 0.0
        %2530 = vmatpush2.msra.mxu0 0.0
        %2531 = vmatprep.subr.mxu0 0.0
        %2532 = vmatpush2.msra.mxu0 0.0
        %2533 = vmatprep.subr.mxu0 0.0
        %2534 = vmatpush2.msra.mxu0 0.0
        %2535 = vmatprep.subr.mxu0 0.0
        %2536 = vmatpush2.msra.mxu0 0.0
        %2537 = vmatprep.subr.mxu0 0.0
        %2538 = vmatpush2.msra.mxu0 0.0
        %2539 = vmatprep.subr.mxu0 0.0
        %2540 = vmatpush2.msra.mxu0 0.0
        %2541 = vmatprep.subr.mxu0 0.0
        %2542 = vmatpush2.msra.mxu0 0.0
        %2543 = vmatprep.subr.mxu0 0.0
        %2544 = vmatpush2.msra.mxu0 0.0
        %2545 = vmatprep.subr.mxu0 0.0
        %2546 = vmatpush2.msra.mxu0 0.0
        %2547 = vmatprep.subr.mxu0 0.0
        %2548 = vmatpush2.msra.mxu0 0.0
        %2549 = vmatprep.mubr.f32.mxu0 0.0
        %v2550 = vand.u32 %v1666, 4294901760
        %2551 = vmatmul.mubr.f32.gmra.mxu0 %v2550
        %v2552 = vpop.f32.mrf.mxu0
        %v2553 = vadd.f32 %v2359, %v2552
        %v2554 = vpop.f32.mrf.mxu0
        %2555 = vmatprep.mubr.f32.mxu0 0.0
        %v2556 = vand.u32 %v1669, 4294901760
        %2557 = vmatmul.mubr.f32.gmra.mxu0 %v2556
        %v2558 = vpop.f32.mrf.mxu0
        %v2559 = vadd.f32 %v2367, %v2558
        %v2560 = vpop.f32.mrf.mxu0
        %2561 = vmatprep.mubr.f32.mxu0 0.0
        %v2562 = vand.u32 %v1672, 4294901760
        %2563 = vmatmul.mubr.f32.gmra.mxu0 %v2562
        %v2564 = vpop.f32.mrf.mxu0
        %v2565 = vadd.f32 %v2375, %v2564
        %v2566 = vpop.f32.mrf.mxu0
        %2567 = vmatprep.mubr.f32.mxu0 0.0
        %v2568 = vand.u32 %v1675, 4294901760
        %2569 = vmatmul.mubr.f32.gmra.mxu0 %v2568
        %v2570 = vpop.f32.mrf.mxu0
        %v2571 = vadd.f32 %v2383, %v2570
        %v2572 = vpop.f32.mrf.mxu0
        %2573 = vmatprep.mubr.f32.mxu0 0.0
        %v2574 = vand.u32 %v1678, 4294901760
        %2575 = vmatmul.mubr.f32.gmra.mxu0 %v2574
        %v2576 = vpop.f32.mrf.mxu0
        %v2577 = vadd.f32 %v2391, %v2576
        %v2578 = vpop.f32.mrf.mxu0
        %2579 = vmatprep.mubr.f32.mxu0 0.0
        %v2580 = vand.u32 %v1681, 4294901760
        %2581 = vmatmul.mubr.f32.gmra.mxu0 %v2580
        %v2582 = vpop.f32.mrf.mxu0
        %v2583 = vadd.f32 %v2399, %v2582
        %v2584 = vpop.f32.mrf.mxu0
        %2585 = vmatprep.mubr.f32.mxu0 0.0
        %v2586 = vand.u32 %v1684, 4294901760
        %2587 = vmatmul.mubr.f32.gmra.mxu0 %v2586
        %v2588 = vpop.f32.mrf.mxu0
        %v2589 = vadd.f32 %v2407, %v2588
        %v2590 = vpop.f32.mrf.mxu0
        %2591 = vmatprep.mubr.f32.mxu0 0.0
        %v2592 = vand.u32 %v1687, 4294901760
        %2593 = vmatmul.mubr.f32.gmra.mxu0 %v2592
        %v2594 = vpop.f32.mrf.mxu0
        %v2595 = vadd.f32 %v2415, %v2594
        %v2596 = vpop.f32.mrf.mxu0
        %2597 = vmatprep.mubr.f32.mxu0 0.0
        %v2598 = vand.u32 %v1690, 4294901760
        %2599 = vmatmul.mubr.f32.gmra.mxu0 %v2598
        %v2600 = vpop.f32.mrf.mxu0
        %v2601 = vadd.f32 %v2423, %v2600
        %v2602 = vpop.f32.mrf.mxu0
        %2603 = vmatprep.mubr.f32.mxu0 0.0
        %v2604 = vand.u32 %v1693, 4294901760
        %2605 = vmatmul.mubr.f32.gmra.mxu0 %v2604
        %v2606 = vpop.f32.mrf.mxu0
        %v2607 = vadd.f32 %v2431, %v2606
        %v2608 = vpop.f32.mrf.mxu0
        %2609 = vmatprep.mubr.f32.mxu0 0.0
        %v2610 = vand.u32 %v1696, 4294901760
        %2611 = vmatmul.mubr.f32.gmra.mxu0 %v2610
        %v2612 = vpop.f32.mrf.mxu0
        %v2613 = vadd.f32 %v2439, %v2612
        %v2614 = vpop.f32.mrf.mxu0
        %2615 = vmatprep.mubr.f32.mxu0 0.0
        %v2616 = vand.u32 %v1699, 4294901760
        %2617 = vmatmul.mubr.f32.gmra.mxu0 %v2616
        %v2618 = vpop.f32.mrf.mxu0
        %v2619 = vadd.f32 %v2447, %v2618
        %v2620 = vpop.f32.mrf.mxu0
        %2621 = vmatprep.mubr.f32.mxu0 0.0
        %v2622 = vand.u32 %v1702, 4294901760
        %2623 = vmatmul.mubr.f32.gmra.mxu0 %v2622
        %v2624 = vpop.f32.mrf.mxu0
        %v2625 = vadd.f32 %v2455, %v2624
        %v2626 = vpop.f32.mrf.mxu0
        %2627 = vmatprep.mubr.f32.mxu0 0.0
        %v2628 = vand.u32 %v1705, 4294901760
        %2629 = vmatmul.mubr.f32.gmra.mxu0 %v2628
        %v2630 = vpop.f32.mrf.mxu0
        %v2631 = vadd.f32 %v2463, %v2630
        %v2632 = vpop.f32.mrf.mxu0
        %2633 = vmatprep.mubr.f32.mxu0 0.0
        %v2634 = vand.u32 %v1708, 4294901760
        %2635 = vmatmul.mubr.f32.gmra.mxu0 %v2634
        %v2636 = vpop.f32.mrf.mxu0
        %v2637 = vadd.f32 %v2471, %v2636
        %v2638 = vpop.f32.mrf.mxu0
        %2639 = vmatprep.mubr.f32.mxu0 0.0
        %v2640 = vand.u32 %v1711, 4294901760
        %2641 = vmatmul.mubr.f32.gmra.mxu0 %v2640
        %v2642 = vpop.f32.mrf.mxu0
        %v2643 = vadd.f32 %v2479, %v2642
        %v2644 = vpop.f32.mrf.mxu0
        %2645 = vdwg.mxu0
        %2646 = vmatprep.subr.mxu0 0.0
        %2647 = vmatpush1.msra.mxu0 0.0
        %2648 = vmatprep.subr.mxu0 0.0
        %2649 = vmatpush1.msra.mxu0 0.0
        %2650 = vmatprep.subr.mxu0 0.0
        %2651 = vmatpush1.msra.mxu0 0.0
        %2652 = vmatprep.subr.mxu0 0.0
        %2653 = vmatpush1.msra.mxu0 0.0
        %2654 = vmatprep.subr.mxu0 0.0
        %2655 = vmatpush1.msra.mxu0 0.0
        %2656 = vmatprep.subr.mxu0 0.0
        %2657 = vmatpush1.msra.mxu0 0.0
        %2658 = vmatprep.subr.mxu0 0.0
        %2659 = vmatpush1.msra.mxu0 0.0
        %2660 = vmatprep.subr.mxu0 0.0
        %2661 = vmatpush1.msra.mxu0 0.0
        %2662 = vmatprep.subr.mxu0 0.0
        %2663 = vmatpush1.msra.mxu0 0.0
        %2664 = vmatprep.subr.mxu0 0.0
        %2665 = vmatpush1.msra.mxu0 0.0
        %2666 = vmatprep.subr.mxu0 0.0
        %2667 = vmatpush1.msra.mxu0 0.0
        %2668 = vmatprep.subr.mxu0 0.0
        %2669 = vmatpush1.msra.mxu0 0.0
        %2670 = vmatprep.subr.mxu0 0.0
        %2671 = vmatpush1.msra.mxu0 0.0
        %2672 = vmatprep.subr.mxu0 0.0
        %2673 = vmatpush1.msra.mxu0 0.0
        %2674 = vmatprep.subr.mxu0 0.0
        %2675 = vmatpush1.msra.mxu0 0.0
        %2676 = vmatprep.subr.mxu0 0.0
        %v2677 = vand.u32 %v1715, 4294901760
        %2678 = vmatpush1.msra.mxu0 %v2677
        %2679 = vmatprep.subr.mxu0 0.0
        %2680 = vmatpush2.msra.mxu0 0.0
        %2681 = vmatprep.subr.mxu0 0.0
        %2682 = vmatpush2.msra.mxu0 0.0
        %2683 = vmatprep.subr.mxu0 0.0
        %2684 = vmatpush2.msra.mxu0 0.0
        %2685 = vmatprep.subr.mxu0 0.0
        %2686 = vmatpush2.msra.mxu0 0.0
        %2687 = vmatprep.subr.mxu0 0.0
        %2688 = vmatpush2.msra.mxu0 0.0
        %2689 = vmatprep.subr.mxu0 0.0
        %2690 = vmatpush2.msra.mxu0 0.0
        %2691 = vmatprep.subr.mxu0 0.0
        %2692 = vmatpush2.msra.mxu0 0.0
        %2693 = vmatprep.subr.mxu0 0.0
        %2694 = vmatpush2.msra.mxu0 0.0
        %2695 = vmatprep.subr.mxu0 0.0
        %2696 = vmatpush2.msra.mxu0 0.0
        %2697 = vmatprep.subr.mxu0 0.0
        %2698 = vmatpush2.msra.mxu0 0.0
        %2699 = vmatprep.subr.mxu0 0.0
        %2700 = vmatpush2.msra.mxu0 0.0
        %2701 = vmatprep.subr.mxu0 0.0
        %2702 = vmatpush2.msra.mxu0 0.0
        %2703 = vmatprep.subr.mxu0 0.0
        %2704 = vmatpush2.msra.mxu0 0.0
        %2705 = vmatprep.subr.mxu0 0.0
        %2706 = vmatpush2.msra.mxu0 0.0
        %2707 = vmatprep.subr.mxu0 0.0
        %2708 = vmatpush2.msra.mxu0 0.0
        %2709 = vmatprep.subr.mxu0 0.0
        %2710 = vmatpush2.msra.mxu0 0.0
        %2711 = vmatprep.mubr.f32.mxu0 0.0
        %v2712 = vand.u32 %v1666, 4294901760
        %2713 = vmatmul.mubr.f32.gmra.mxu0 %v2712
        %v2714 = vpop.f32.mrf.mxu0
        %v2715 = vadd.f32 %v2553, %v2714
        %v2716 = vpop.f32.mrf.mxu0
        %2717 = vmatprep.mubr.f32.mxu0 0.0
        %v2718 = vand.u32 %v1669, 4294901760
        %2719 = vmatmul.mubr.f32.gmra.mxu0 %v2718
        %v2720 = vpop.f32.mrf.mxu0
        %v2721 = vadd.f32 %v2559, %v2720
        %v2722 = vpop.f32.mrf.mxu0
        %2723 = vmatprep.mubr.f32.mxu0 0.0
        %v2724 = vand.u32 %v1672, 4294901760
        %2725 = vmatmul.mubr.f32.gmra.mxu0 %v2724
        %v2726 = vpop.f32.mrf.mxu0
        %v2727 = vadd.f32 %v2565, %v2726
        %v2728 = vpop.f32.mrf.mxu0
        %2729 = vmatprep.mubr.f32.mxu0 0.0
        %v2730 = vand.u32 %v1675, 4294901760
        %2731 = vmatmul.mubr.f32.gmra.mxu0 %v2730
        %v2732 = vpop.f32.mrf.mxu0
        %v2733 = vadd.f32 %v2571, %v2732
        %v2734 = vpop.f32.mrf.mxu0
        %2735 = vmatprep.mubr.f32.mxu0 0.0
        %v2736 = vand.u32 %v1678, 4294901760
        %2737 = vmatmul.mubr.f32.gmra.mxu0 %v2736
        %v2738 = vpop.f32.mrf.mxu0
        %v2739 = vadd.f32 %v2577, %v2738
        %v2740 = vpop.f32.mrf.mxu0
        %2741 = vmatprep.mubr.f32.mxu0 0.0
        %v2742 = vand.u32 %v1681, 4294901760
        %2743 = vmatmul.mubr.f32.gmra.mxu0 %v2742
        %v2744 = vpop.f32.mrf.mxu0
        %v2745 = vadd.f32 %v2583, %v2744
        %v2746 = vpop.f32.mrf.mxu0
        %2747 = vmatprep.mubr.f32.mxu0 0.0
        %v2748 = vand.u32 %v1684, 4294901760
        %2749 = vmatmul.mubr.f32.gmra.mxu0 %v2748
        %v2750 = vpop.f32.mrf.mxu0
        %v2751 = vadd.f32 %v2589, %v2750
        %v2752 = vpop.f32.mrf.mxu0
        %2753 = vmatprep.mubr.f32.mxu0 0.0
        %v2754 = vand.u32 %v1687, 4294901760
        %2755 = vmatmul.mubr.f32.gmra.mxu0 %v2754
        %v2756 = vpop.f32.mrf.mxu0
        %v2757 = vadd.f32 %v2595, %v2756
        %v2758 = vpop.f32.mrf.mxu0
        %2759 = vmatprep.mubr.f32.mxu0 0.0
        %v2760 = vand.u32 %v1690, 4294901760
        %2761 = vmatmul.mubr.f32.gmra.mxu0 %v2760
        %v2762 = vpop.f32.mrf.mxu0
        %v2763 = vadd.f32 %v2601, %v2762
        %v2764 = vpop.f32.mrf.mxu0
        %2765 = vmatprep.mubr.f32.mxu0 0.0
        %v2766 = vand.u32 %v1693, 4294901760
        %2767 = vmatmul.mubr.f32.gmra.mxu0 %v2766
        %v2768 = vpop.f32.mrf.mxu0
        %v2769 = vadd.f32 %v2607, %v2768
        %v2770 = vpop.f32.mrf.mxu0
        %2771 = vmatprep.mubr.f32.mxu0 0.0
        %v2772 = vand.u32 %v1696, 4294901760
        %2773 = vmatmul.mubr.f32.gmra.mxu0 %v2772
        %v2774 = vpop.f32.mrf.mxu0
        %v2775 = vadd.f32 %v2613, %v2774
        %v2776 = vpop.f32.mrf.mxu0
        %2777 = vmatprep.mubr.f32.mxu0 0.0
        %v2778 = vand.u32 %v1699, 4294901760
        %2779 = vmatmul.mubr.f32.gmra.mxu0 %v2778
        %v2780 = vpop.f32.mrf.mxu0
        %v2781 = vadd.f32 %v2619, %v2780
        %v2782 = vpop.f32.mrf.mxu0
        %2783 = vmatprep.mubr.f32.mxu0 0.0
        %v2784 = vand.u32 %v1702, 4294901760
        %2785 = vmatmul.mubr.f32.gmra.mxu0 %v2784
        %v2786 = vpop.f32.mrf.mxu0
        %v2787 = vadd.f32 %v2625, %v2786
        %v2788 = vpop.f32.mrf.mxu0
        %2789 = vmatprep.mubr.f32.mxu0 0.0
        %v2790 = vand.u32 %v1705, 4294901760
        %2791 = vmatmul.mubr.f32.gmra.mxu0 %v2790
        %v2792 = vpop.f32.mrf.mxu0
        %v2793 = vadd.f32 %v2631, %v2792
        %v2794 = vpop.f32.mrf.mxu0
        %2795 = vmatprep.mubr.f32.mxu0 0.0
        %v2796 = vand.u32 %v1708, 4294901760
        %2797 = vmatmul.mubr.f32.gmra.mxu0 %v2796
        %v2798 = vpop.f32.mrf.mxu0
        %v2799 = vadd.f32 %v2637, %v2798
        %v2800 = vpop.f32.mrf.mxu0
        %2801 = vmatprep.mubr.f32.mxu0 0.0
        %v2802 = vand.u32 %v1711, 4294901760
        %2803 = vmatmul.mubr.f32.gmra.mxu0 %v2802
        %v2804 = vpop.f32.mrf.mxu0
        %v2805 = vadd.f32 %v2643, %v2804
        %v2806 = vpop.f32.mrf.mxu0
        %2807 = vdwg.mxu0
        %v2808 = vadd.f32 %v272, %v2715
        %v2809 = vadd.f32 %v273, %v2721
        %v2810 = vadd.f32 %v274, %v2727
        %v2811 = vadd.f32 %v275, %v2733
        %v2812 = vadd.f32 %v276, %v2739
        %v2813 = vadd.f32 %v277, %v2745
        %v2814 = vadd.f32 %v278, %v2751
        %v2815 = vadd.f32 %v279, %v2757
        %v2816 = vadd.f32 %v280, %v2763
        %v2817 = vadd.f32 %v281, %v2769
        %v2818 = vadd.f32 %v282, %v2775
        %v2819 = vadd.f32 %v283, %v2781
        %v2820 = vadd.f32 %v284, %v2787
        %v2821 = vadd.f32 %v285, %v2793
        %v2822 = vadd.f32 %v286, %v2799
        %v2823 = vadd.f32 %v287, %v2805
        %2824 = vst [vmem:[%s260] sm:$0xff] %v2808
        %2825 = vst [vmem:[%s260 + $0x8] sm:$0xff] %v2809
        %2826 = vst [vmem:[%s260 + $0x10] sm:$0xff] %v2810
        %2827 = vst [vmem:[%s260 + $0x18] sm:$0xff] %v2811
        %2828 = vst [vmem:[%s260 + $0x20] sm:$0xff] %v2812
        %2829 = vst [vmem:[%s260 + $0x28] sm:$0xff] %v2813
        %2830 = vst [vmem:[%s260 + $0x30] sm:$0xff] %v2814
        %2831 = vst [vmem:[%s260 + $0x38] sm:$0xff] %v2815
        %2832 = vst [vmem:[%s260 + $0x40] sm:$0xff] %v2816
        %2833 = vst [vmem:[%s260 + $0x48] sm:$0xff] %v2817
        %2834 = vst [vmem:[%s260 + $0x50] sm:$0xff] %v2818
        %2835 = vst [vmem:[%s260 + $0x58] sm:$0xff] %v2819
        %2836 = vst [vmem:[%s260 + $0x60] sm:$0xff] %v2820
        %2837 = vst [vmem:[%s260 + $0x68] sm:$0xff] %v2821
        %2838 = vst [vmem:[%s260 + $0x70] sm:$0xff] %v2822
        %2839 = vst [vmem:[%s260 + $0x78] sm:$0xff] %v2823
        %s2840 = sand.u32 %s124, 1
        %s2841 = scalar_lea.sflag [#allocation4], %s2840
        %s2842 = sand.u32 %s124, 1
        %s2843 = smul.addr %s2842, 128
        %s2844 = scalar_lea.vmem [#allocation7], %s2843
        %s2845 = sand.u32 %s150, 1
        %s2846 = scalar_lea.sflag [#allocation9], %s2845
        %s2847 = sand.u32 %s150, 1
        %s2848 = smul.addr %s2847, 4
        %s2849 = scalar_lea.vmem [#allocation8], %s2848
        // Predicated region
        $region45: #{tpu_custom_call.1} parent=35 // pred_check
          %p2850 = pneg %p134
        $region46: #{tpu_custom_call.1} parent=35 // pred_check_branch
          %2852 = sbr.rel (%p2850) target = $region48
        $region47: #{tpu_custom_call.1} parent=35 // pred_region
          %s2853 = smul.u32 16, %s27
          %s2855 = ssub.s32 2048, 2048
          %2856 = vsyncadd %s2841, %s2855
          %s2857 = smul.addr %s2853, 128
          %s2858 = scalar_lea.hbm %s4, %s2857
          %s2859 = sshll.u32 %s2844, 4
          %s2860 = int_to_ptr.vmem [resolvable:$true] %s2859
          %2865 = dma.vmem_to_hbm [thread:$0]  %s2860, 2048, %s2858, %s2841, 128, 128, 8
        $region48: #{tpu_custom_call.1} parent=35 // pred_fallthru
          _
        // Predicated region
        $region49: #{tpu_custom_call.1} parent=35 // pred_check
          %p2866 = pneg %p160
        $region50: #{tpu_custom_call.1} parent=35 // pred_check_branch
          %2868 = sbr.rel (%p2866) target = $region52
        $region51: #{tpu_custom_call.1} parent=35 // pred_region
          %s2870 = ssub.s32 64, 64
          %2871 = vsyncadd %s2846, %s2870
          %s2872 = smul.addr %s27, 64
          %s2873 = scalar_lea.hbm %s5, %s2872
          %s2875 = sshll.u32 %s2849, 4
          %s2876 = int_to_ptr.vmem [resolvable:$true] %s2875
          %2878 = dma.vmem_to_hbm [thread:$0]  %s2876, 64, %s2873, %s2846
        $region52: #{tpu_custom_call.1} parent=35 // pred_fallthru
          _
      $region36: #{tpu_custom_call.1} parent=5 // pred_fallthru
        _
      %p2879 = scmp.le.s32.totalorder 2, %s22
      // Predicated region
      $region53: #{tpu_custom_call.1} parent=5 // pred_check
        %p2880 = pneg %p2879
      $region54: #{tpu_custom_call.1} parent=5 // pred_check_branch
        %2882 = sbr.rel (%p2880) target = $region56
      $region55: #{tpu_custom_call.1} parent=5 // pred_region
        %s2883 = ssub.s32 %s22, 2
        // Predicated region
        $region57: #{tpu_custom_call.1} parent=55 // pred_check
          %p2884 = pneg %p140
        $region58: #{tpu_custom_call.1} parent=55 // pred_check_branch
          %2886 = sbr.rel (%p2884) target = $region60
        $region59: #{tpu_custom_call.1} parent=55 // pred_region
          %s2887 = sand.u32 %s125, 1
          %s2888 = scalar_lea.sflag [#allocation4], %s2887
          %s2889 = sand.u32 %s125, 1
          %s2890 = smul.addr %s2889, 128
          %s2891 = scalar_lea.vmem [#allocation7], %s2890
          %2892 = dma.done %s2888, 2048
        $region60: #{tpu_custom_call.1} parent=55 // pred_fallthru
          _
        // Predicated region
        $region61: #{tpu_custom_call.1} parent=55 // pred_check
          %p2893 = pneg %p166
        $region62: #{tpu_custom_call.1} parent=55 // pred_check_branch
          %2895 = sbr.rel (%p2893) target = $region64
        $region63: #{tpu_custom_call.1} parent=55 // pred_region
          %s2896 = sand.u32 %s151, 1
          %s2897 = scalar_lea.sflag [#allocation9], %s2896
          %s2898 = sand.u32 %s151, 1
          %s2899 = smul.addr %s2898, 4
          %s2900 = scalar_lea.vmem [#allocation8], %s2899
          %2901 = dma.done %s2897, 64
        $region64: #{tpu_custom_call.1} parent=55 // pred_fallthru
          _
      $region56: #{tpu_custom_call.1} parent=5 // pred_fallthru
        _
    $region6: #{tpu_custom_call.1} parent=1 // loop_footer
      %s26 = sadd.s32 1, %s22
    $region7: #{tpu_custom_call.1} parent=1 // loop_footer_branch
      %21 = sbr.rel target = $region3
    $region8: #{tpu_custom_call.1} parent=1 // loop_exit
      _
    %2902 = vsyncpa [#allocation3], 1
    %s2903 = scalar_lea.sflag [#allocation3], 1
    %2904 = vsyncpa %s2903, 1
    %2905 = vsyncpa [#allocation4], 1
    %s2906 = scalar_lea.sflag [#allocation4], 1
    %2907 = vsyncpa %s2906, 1
    %2908 = vsyncpa [#allocation9], 1
    %s2909 = scalar_lea.sflag [#allocation9], 1
    %2910 = vsyncpa %s2909, 1
    %2911 = vsyncpa [#allocation5], 1
    %s2912 = scalar_lea.sflag [#allocation5], 1
    %2913 = vsyncpa %s2912, 1

</llo_original>
